<compile_context>
chip_gen: v7x
topology: tpu7x:2x2x1
jax: 0.10.0
libtpu: 0.0.40
codegen_flags: <defaults>
</compile_context>

<pallas_src>
import functools

import jax
import jax.numpy as jnp
from jax.experimental import pallas as pl
from jax.experimental.pallas import tpu as pltpu


# --------------------------------------------------------------------------
# Pallas kernel: forward LSTM recurrence (batch-on-lanes) + fused epilogue
# --------------------------------------------------------------------------
def _bilstm_cls_kernel(gxf_ref,   # (T, 4H, tb) f32  fwd x-gates (+bias, i/f/o pre-scaled 0.5)
                       gb_ref,    # (4H, tb)    f32  bwd x-gates at t=T-1 (same pre-scaling)
                       mask_ref,  # (1, tb)     f32  1.0 where len == T else 0.0
                       whh_ref,   # (4H, H)     f32  W_hh_fwd^T, i/f/o rows pre-scaled 0.5
                       wcf_ref,   # (C, H)      f32  classifier weights (forward half)^T
                       wcb_ref,   # (C, H)      f32  classifier weights (backward half)^T
                       bcls_ref,  # (C, 1)      f32
                       out_ref):  # (C, tb)     f32
    T, H4, tb = gxf_ref.shape
    H = H4 // 4
    whh = whh_ref[...]                       # resident across the whole loop

    def gate_act(pre):                       # pre: (4H, tb); i/f/o rows carry z/2
        t = jnp.tanh(pre)                    # single EUP pass over the whole block
        i = 0.5 * t[0:H] + 0.5               # sigmoid(z) = 0.5*tanh(z/2) + 0.5
        f = 0.5 * t[H:2 * H] + 0.5
        g = t[2 * H:3 * H]                   # candidate: plain tanh(z)
        o = 0.5 * t[3 * H:4 * H] + 0.5
        return i, f, g, o

    def step(t, carry):
        h, c = carry
        gates = gxf_ref[t] + jnp.dot(whh, h, preferred_element_type=jnp.float32)
        i, f, g, o = gate_act(gates)
        c = f * c + i * g
        h = o * jnp.tanh(c)
        return h, c

    h0 = jnp.zeros((H, tb), jnp.float32)
    c0 = jnp.zeros((H, tb), jnp.float32)
    if T <= 16:                              # static: full unroll
        h, c = h0, c0
        for t in range(T):
            h, c = step(t, (h, c))
    else:                                    # large T: bounded live ranges
        h, c = jax.lax.fori_loop(0, T, step, (h0, c0), unroll=4)
    h_fwd = h

    # Backward direction: out[:, T-1] of the reverse LSTM is its very first
    # step from a zero state on x[T-1]  =>  no W_hh_b matmul at all.
    i_b, _, g_b, o_b = gate_act(gb_ref[...])
    h_bwd = o_b * jnp.tanh(i_b * g_b)

    # pad_packed_sequence zeroes padded positions: out[:, -1] is nonzero only
    # for sequences whose length equals T.  relu(where(m, h, 0)) == relu(h)*m.
    mask = mask_ref[...]                     # (1, tb) broadcasts over sublanes
    h_f = jnp.maximum(h_fwd, 0.0) * mask
    h_b = jnp.maximum(h_bwd, 0.0) * mask

    out_ref[...] = (jnp.dot(wcf_ref[...], h_f, preferred_element_type=jnp.float32)
                    + jnp.dot(wcb_ref[...], h_b, preferred_element_type=jnp.float32)
                    + bcls_ref[...])


# --------------------------------------------------------------------------
# Wrapper: embeddings + input projection (XLA glue) + pallas_call
# --------------------------------------------------------------------------
def _pick_batch_tile(B, batch_tile):
    tb = min(batch_tile, B)
    while B % tb:                      # largest divisor of B that is <= batch_tile
        tb -= 1
    if B >= 16 and B // tb < 2:        # v7x: keep >= 2 parallel blocks so both
        tb2 = B // 2                   # TensorCores get work
        while B % tb2:
            tb2 -= 1
        tb = tb2
    return tb


@functools.partial(jax.jit, static_argnames=("batch_tile",))
def bilstm_cnn_forward(xw, xp, xdt, data_len, params, *, batch_tile=128):
    B, T = xw.shape
    H = params["w_hh_f"].shape[0]
    C = params["b_cls"].shape[-1]
    H4 = 4 * H

    tb = _pick_batch_tile(B, batch_tile)
    n_bt = B // tb

    # ---- glue: embedding gathers + input projection (plain XLA matmuls) ----
    embs = jnp.concatenate([params["emb1"][xw], params["emb2"][xp],
                            params["emb3"][xdt]], axis=-1).astype(jnp.float32)

    # sigmoid-via-tanh trick: pre-scale the i/f/o gate columns by 0.5 so the
    # kernel only needs tanh (sigmoid(z) = 0.5*tanh(z/2) + 0.5).
    scale = jnp.concatenate([jnp.full((H,), 0.5), jnp.full((H,), 0.5),
                             jnp.ones((H,)), jnp.full((H,), 0.5)]).astype(jnp.float32)

    gxf = (jnp.einsum("bte,eh->bth", embs, params["w_ih_f"],
                      precision=jax.lax.Precision.HIGHEST,
                      preferred_element_type=jnp.float32)
           + params["b_f"]) * scale                                    # (B, T, 4H)
    gb = (jnp.dot(embs[:, T - 1], params["w_ih_b"],
                  precision=jax.lax.Precision.HIGHEST,
                  preferred_element_type=jnp.float32)
          + params["b_b"]) * scale                                     # (B, 4H)

    # batch-on-lanes layout (layout plumbing only; cheap XLA transposes)
    gxf_t = gxf.reshape(n_bt, tb, T, H4).transpose(0, 2, 3, 1)          # (n_bt,T,4H,tb)
    gb_t = gb.reshape(n_bt, tb, H4).transpose(0, 2, 1)                  # (n_bt,4H,tb)
    mask_t = (data_len.astype(jnp.int32) >= T).astype(jnp.float32) \
        .reshape(n_bt, 1, tb)                                           # (n_bt,1,tb)

    whh_t = (params["w_hh_f"].T * scale[:, None]).astype(jnp.float32)   # (4H, H)
    wcf_t = params["w_cls"][:H].T.astype(jnp.float32)                   # (C, H)
    wcb_t = params["w_cls"][H:].T.astype(jnp.float32)                   # (C, H)
    bcls_t = params["b_cls"].reshape(C, 1).astype(jnp.float32)          # (C, 1)

    # VMEM budgeting: only raise the scoped limit when the per-tile footprint
    # actually needs it (demo shapes fit the default on every generation).
    tile_bytes = 4 * (T * H4 * tb + H4 * tb + tb + H4 * H + 2 * C * H + C + C * tb)
    vmem_need = 4 * tile_bytes + (1 << 20)       # double-buffered in/out + slack
    if vmem_need > 16 * 1024 * 1024:
        compiler_params = pltpu.CompilerParams(
            dimension_semantics=("parallel",),
            vmem_limit_bytes=min(vmem_need, 64 * 1024 * 1024))  # v7x physical cap
    else:
        compiler_params = pltpu.CompilerParams(dimension_semantics=("parallel",))

    out_t = pl.pallas_call(
        _bilstm_cls_kernel,
        out_shape=jax.ShapeDtypeStruct((n_bt, C, tb), jnp.float32),
        grid=(n_bt,),
        in_specs=[
            pl.BlockSpec((None, T, H4, tb), lambda i: (i, 0, 0, 0)),  # fwd gates tile
            pl.BlockSpec((None, H4, tb), lambda i: (i, 0, 0)),        # bwd gates (t=T-1)
            pl.BlockSpec((None, 1, tb), lambda i: (i, 0, 0)),         # valid-last mask
            pl.BlockSpec((H4, H), lambda i: (0, 0)),                  # W_hh_f^T (scaled)
            pl.BlockSpec((C, H), lambda i: (0, 0)),                   # w_cls fwd half ^T
            pl.BlockSpec((C, H), lambda i: (0, 0)),                   # w_cls bwd half ^T
            pl.BlockSpec((C, 1), lambda i: (0, 0)),                   # b_cls ^T
        ],
        out_specs=pl.BlockSpec((None, C, tb), lambda i: (i, 0, 0)),
        compiler_params=compiler_params,
    )(gxf_t, gb_t, mask_t, whh_t, wcf_t, wcb_t, bcls_t)

    return out_t.transpose(0, 2, 1).reshape(B, C)                      # (B, C)


# --------------------------------------------------------------------------
# Pure-JAX reference (full pack/pad semantics, f32) for correctness checks
# --------------------------------------------------------------------------
def reference_forward(xw, xp, xdt, data_len, params):
    embs = jnp.concatenate([params["emb1"][xw], params["emb2"][xp],
                            params["emb3"][xdt]], axis=-1).astype(jnp.float32)
    B, T, _ = embs.shape
    H = params["w_hh_f"].shape[0]
    lens = data_len.astype(jnp.int32)

    def mm(a, b):
        return jnp.dot(a, b, precision=jax.lax.Precision.HIGHEST,
                       preferred_element_type=jnp.float32)

    def cell(x_t, h, c, wih, whh, b):
        g = mm(x_t, wih) + mm(h, whh) + b
        i = jax.nn.sigmoid(g[:, :H])
        f = jax.nn.sigmoid(g[:, H:2 * H])
        gg = jnp.tanh(g[:, 2 * H:3 * H])
        o = jax.nn.sigmoid(g[:, 3 * H:])
        c_new = f * c + i * gg
        return o * jnp.tanh(c_new), c_new

    h = c = jnp.zeros((B, H), jnp.float32)
    outs_f = []
    for t in range(T):
        h_new, c_new = cell(embs[:, t], h, c,
                            params["w_ih_f"], params["w_hh_f"], params["b_f"])
        valid = (lens > t)[:, None]
        h = jnp.where(valid, h_new, h)
        c = jnp.where(valid, c_new, c)
        outs_f.append(jnp.where(valid, h, 0.0))

    h = c = jnp.zeros((B, H), jnp.float32)
    outs_b = [None] * T
    for t in range(T - 1, -1, -1):
        h_new, c_new = cell(embs[:, t], h, c,
                            params["w_ih_b"], params["w_hh_b"], params["b_b"])
        valid = (lens > t)[:, None]
        h = jnp.where(valid, h_new, h)
        c = jnp.where(valid, c_new, c)
        outs_b[t] = jnp.where(valid, h, 0.0)

    out = jnp.concatenate([jnp.stack(outs_f, 1), jnp.stack(outs_b, 1)], -1)
    last = jax.nn.relu(out[:, -1])
    return mm(last, params["w_cls"]) + params["b_cls"]


# --------------------------------------------------------------------------
# Deterministic parameter construction + demo
# --------------------------------------------------------------------------
def make_params(key, vocab_size, pos_size, drugtype_size,
                e1, e2, e3, hidden_dim, num_classes):
    E = e1 + e2 + e3
    H = hidden_dim
    ks = jax.random.split(key, 12)
    k = 1.0 / jnp.sqrt(H)

    def uni(rng, shape, bound):
        return jax.random.uniform(rng, shape, jnp.float32, -bound, bound)

    emb1 = jax.random.normal(ks[0], (vocab_size, e1), jnp.float32)
    emb2 = jax.random.normal(ks[1], (pos_size, e2), jnp.float32)
    emb3 = jax.random.normal(ks[2], (drugtype_size, e3), jnp.float32)
    # padding_idx=0 -> zero row
    emb1 = emb1.at[0].set(0.0)
    emb2 = emb2.at[0].set(0.0)
    emb3 = emb3.at[0].set(0.0)

    kc = 1.0 / jnp.sqrt(2 * H)
    params = dict(
        emb1=emb1, emb2=emb2, emb3=emb3,
        # stored pre-transposed: (in_features, 4H); gate order i,f,g,o
        w_ih_f=uni(ks[3], (E, 4 * H), k),
        w_hh_f=uni(ks[4], (H, 4 * H), k),
        b_f=uni(ks[5], (1, 4 * H), k) + uni(ks[6], (1, 4 * H), k),
        w_ih_b=uni(ks[7], (E, 4 * H), k),
        w_hh_b=uni(ks[8], (H, 4 * H), k),
        b_b=uni(ks[9], (1, 4 * H), k) + uni(ks[10], (1, 4 * H), k),
        w_cls=uni(ks[11], (2 * H, num_classes), kc),
        b_cls=jnp.zeros((1, num_classes), jnp.float32),
    )
    return params


if __name__ == "__main__":
    # Small, module-consistent shapes.
    B, T = 8, 8
    num_classes = 5
    word_vocab_size, pos_size, drug_type_size = 100, 20, 6
    e1, e2, e3 = 8, 4, 4          # embedding_dim1/2/3 -> E = 16
    hidden_dim = 32               # H -> 4H = 128, 2H = 64
    # num_lstm_layers = 1 (see TODO above); dropout = 0 (eval mode)

    key = jax.random.PRNGKey(0)
    kp, kw, kpos, kdt = jax.random.split(key, 4)
    params = make_params(kp, word_vocab_size, pos_size, drug_type_size,
                         e1, e2, e3, hidden_dim, num_classes)

    xw = jax.random.randint(kw, (B, T), 1, word_vocab_size, jnp.int32)
    xp = jax.random.randint(kpos, (B, T), 1, pos_size, jnp.int32)
    xdt = jax.random.randint(kdt, (B, T), 1, drug_type_size, jnp.int32)
    data_len = jnp.array([8, 5, 8, 3, 8, 8, 2, 8], jnp.int32)

    # pad_packed_sequence returns length max(data_len); the kernel's out[:, -1]
    # shortcut requires the batch to be padded exactly to its max length.
    assert int(jnp.max(data_len)) == T, "kernel assumes max(data_len) == T"

    out = jax.block_until_ready(bilstm_cnn_forward(xw, xp, xdt, data_len, params))
    assert out.shape == (B, num_classes)

    ref = jax.block_until_ready(reference_forward(xw, xp, xdt, data_len, params))
    assert jnp.allclose(out, ref, atol=3e-2, rtol=3e-2), (
        f"mismatch vs f32 reference: max abs diff {jnp.max(jnp.abs(out - ref))}")

    print("KERNEL_OK")
</pallas_src>

<mosaic_0001>
module attributes {stable_mosaic.version = 11 : i64} {
  func.func @_bilstm_cls_kernel(%arg0: i32, %arg1: memref<1x8x128x8xf32, #tpu.memory_space<vmem>>, %arg2: memref<1x128x8xf32, #tpu.memory_space<vmem>>, %arg3: memref<1x1x8xf32, #tpu.memory_space<vmem>>, %arg4: memref<128x32xf32, #tpu.memory_space<vmem>>, %arg5: memref<5x32xf32, #tpu.memory_space<vmem>>, %arg6: memref<5x32xf32, #tpu.memory_space<vmem>>, %arg7: memref<5x1xf32, #tpu.memory_space<vmem>>, %arg8: memref<1x5x8xf32, #tpu.memory_space<vmem>>) attributes {dimension_semantics = [#tpu.dimension_semantics<parallel>], iteration_bounds = array<i64: 1>, scalar_prefetch = 0 : i64, scratch_operands = 0 : i64, tpu.core_type = #tpu.core_type<tc>, window_params = [{transform_indices = @transform_0, window_bounds = array<i64: 1, 8, 128, 8>}, {transform_indices = @transform_1, window_bounds = array<i64: 1, 128, 8>}, {transform_indices = @transform_2, window_bounds = array<i64: 1, 1, 8>}, {pipeline_mode = #tpu.pipeline_mode<synchronous>, transform_indices = @transform_3, window_bounds = array<i64: 128, 32>}, {pipeline_mode = #tpu.pipeline_mode<synchronous>, transform_indices = @transform_4, window_bounds = array<i64: 5, 32>}, {pipeline_mode = #tpu.pipeline_mode<synchronous>, transform_indices = @transform_5, window_bounds = array<i64: 5, 32>}, {pipeline_mode = #tpu.pipeline_mode<synchronous>, transform_indices = @transform_6, window_bounds = array<i64: 5, 1>}, {transform_indices = @transform_7, window_bounds = array<i64: 1, 5, 8>}]} {
    %c0 = arith.constant 0 : index
    %c0_0 = arith.constant 0 : index
    %0 = vector.load %arg4[%c0, %c0_0] : memref<128x32xf32, #tpu.memory_space<vmem>>, vector<128x32xf32>
    %cst = arith.constant 0.000000e+00 : f32
    %1 = vector.broadcast %cst : f32 to vector<32x8xf32>
    %cst_1 = arith.constant 0.000000e+00 : f32
    %2 = vector.broadcast %cst_1 : f32 to vector<32x8xf32>
    %c0_2 = arith.constant 0 : index
    %c0_3 = arith.constant 0 : index
    %c0_4 = arith.constant 0 : index
    %c0_5 = arith.constant 0 : index
    %3 = vector.load %arg1[%c0_2, %c0_3, %c0_4, %c0_5] : memref<1x8x128x8xf32, #tpu.memory_space<vmem>>, vector<1x1x128x8xf32>
    %4 = vector.shape_cast %3 : vector<1x1x128x8xf32> to vector<128x8xf32>
    %cst_6 = arith.constant dense<0.000000e+00> : vector<128x8xf32>
    %5 = tpu.matmul %0, %1, %cst_6 {dimension_numbers = #tpu.dot_dimension_numbers<[1], [0], [0], [1], [0, 0, 1, 1], [], []>} : vector<128x32xf32>, vector<32x8xf32>, vector<128x8xf32> -> vector<128x8xf32>
    %6 = arith.addf %4, %5 : vector<128x8xf32>
    %7 = math.tanh %6 : vector<128x8xf32>
    %8 = vector.extract_strided_slice %7 {offsets = [0, 0], sizes = [32, 8], strides = [1, 1]} : vector<128x8xf32> to vector<32x8xf32>
    %cst_7 = arith.constant 5.000000e-01 : f32
    %9 = vector.broadcast %cst_7 : f32 to vector<32x8xf32>
    %10 = arith.mulf %9, %8 : vector<32x8xf32>
    %cst_8 = arith.constant 5.000000e-01 : f32
    %11 = vector.broadcast %cst_8 : f32 to vector<32x8xf32>
    %12 = arith.addf %10, %11 : vector<32x8xf32>
    %13 = vector.extract_strided_slice %7 {offsets = [32, 0], sizes = [32, 8], strides = [1, 1]} : vector<128x8xf32> to vector<32x8xf32>
    %cst_9 = arith.constant 5.000000e-01 : f32
    %14 = vector.broadcast %cst_9 : f32 to vector<32x8xf32>
    %15 = arith.mulf %14, %13 : vector<32x8xf32>
    %cst_10 = arith.constant 5.000000e-01 : f32
    %16 = vector.broadcast %cst_10 : f32 to vector<32x8xf32>
    %17 = arith.addf %15, %16 : vector<32x8xf32>
    %18 = vector.extract_strided_slice %7 {offsets = [64, 0], sizes = [32, 8], strides = [1, 1]} : vector<128x8xf32> to vector<32x8xf32>
    %19 = vector.extract_strided_slice %7 {offsets = [96, 0], sizes = [32, 8], strides = [1, 1]} : vector<128x8xf32> to vector<32x8xf32>
    %cst_11 = arith.constant 5.000000e-01 : f32
    %20 = vector.broadcast %cst_11 : f32 to vector<32x8xf32>
    %21 = arith.mulf %20, %19 : vector<32x8xf32>
    %cst_12 = arith.constant 5.000000e-01 : f32
    %22 = vector.broadcast %cst_12 : f32 to vector<32x8xf32>
    %23 = arith.addf %21, %22 : vector<32x8xf32>
    %24 = arith.mulf %17, %2 : vector<32x8xf32>
    %25 = arith.mulf %12, %18 : vector<32x8xf32>
    %26 = arith.addf %24, %25 : vector<32x8xf32>
    %27 = math.tanh %26 : vector<32x8xf32>
    %28 = arith.mulf %23, %27 : vector<32x8xf32>
    %c0_13 = arith.constant 0 : index
    %c1 = arith.constant 1 : index
    %c0_14 = arith.constant 0 : index
    %c0_15 = arith.constant 0 : index
    %29 = vector.load %arg1[%c0_13, %c1, %c0_14, %c0_15] : memref<1x8x128x8xf32, #tpu.memory_space<vmem>>, vector<1x1x128x8xf32>
    %30 = vector.shape_cast %29 : vector<1x1x128x8xf32> to vector<128x8xf32>
    %cst_16 = arith.constant dense<0.000000e+00> : vector<128x8xf32>
    %31 = tpu.matmul %0, %28, %cst_16 {dimension_numbers = #tpu.dot_dimension_numbers<[1], [0], [0], [1], [0, 0, 1, 1], [], []>} : vector<128x32xf32>, vector<32x8xf32>, vector<128x8xf32> -> vector<128x8xf32>
    %32 = arith.addf %30, %31 : vector<128x8xf32>
    %33 = math.tanh %32 : vector<128x8xf32>
    %34 = vector.extract_strided_slice %33 {offsets = [0, 0], sizes = [32, 8], strides = [1, 1]} : vector<128x8xf32> to vector<32x8xf32>
    %cst_17 = arith.constant 5.000000e-01 : f32
    %35 = vector.broadcast %cst_17 : f32 to vector<32x8xf32>
    %36 = arith.mulf %35, %34 : vector<32x8xf32>
    %cst_18 = arith.constant 5.000000e-01 : f32
    %37 = vector.broadcast %cst_18 : f32 to vector<32x8xf32>
    %38 = arith.addf %36, %37 : vector<32x8xf32>
    %39 = vector.extract_strided_slice %33 {offsets = [32, 0], sizes = [32, 8], strides = [1, 1]} : vector<128x8xf32> to vector<32x8xf32>
    %cst_19 = arith.constant 5.000000e-01 : f32
    %40 = vector.broadcast %cst_19 : f32 to vector<32x8xf32>
    %41 = arith.mulf %40, %39 : vector<32x8xf32>
    %cst_20 = arith.constant 5.000000e-01 : f32
    %42 = vector.broadcast %cst_20 : f32 to vector<32x8xf32>
    %43 = arith.addf %41, %42 : vector<32x8xf32>
    %44 = vector.extract_strided_slice %33 {offsets = [64, 0], sizes = [32, 8], strides = [1, 1]} : vector<128x8xf32> to vector<32x8xf32>
    %45 = vector.extract_strided_slice %33 {offsets = [96, 0], sizes = [32, 8], strides = [1, 1]} : vector<128x8xf32> to vector<32x8xf32>
    %cst_21 = arith.constant 5.000000e-01 : f32
    %46 = vector.broadcast %cst_21 : f32 to vector<32x8xf32>
    %47 = arith.mulf %46, %45 : vector<32x8xf32>
    %cst_22 = arith.constant 5.000000e-01 : f32
    %48 = vector.broadcast %cst_22 : f32 to vector<32x8xf32>
    %49 = arith.addf %47, %48 : vector<32x8xf32>
    %50 = arith.mulf %43, %26 : vector<32x8xf32>
    %51 = arith.mulf %38, %44 : vector<32x8xf32>
    %52 = arith.addf %50, %51 : vector<32x8xf32>
    %53 = math.tanh %52 : vector<32x8xf32>
    %54 = arith.mulf %49, %53 : vector<32x8xf32>
    %c0_23 = arith.constant 0 : index
    %c2 = arith.constant 2 : index
    %c0_24 = arith.constant 0 : index
    %c0_25 = arith.constant 0 : index
    %55 = vector.load %arg1[%c0_23, %c2, %c0_24, %c0_25] : memref<1x8x128x8xf32, #tpu.memory_space<vmem>>, vector<1x1x128x8xf32>
    %56 = vector.shape_cast %55 : vector<1x1x128x8xf32> to vector<128x8xf32>
    %cst_26 = arith.constant dense<0.000000e+00> : vector<128x8xf32>
    %57 = tpu.matmul %0, %54, %cst_26 {dimension_numbers = #tpu.dot_dimension_numbers<[1], [0], [0], [1], [0, 0, 1, 1], [], []>} : vector<128x32xf32>, vector<32x8xf32>, vector<128x8xf32> -> vector<128x8xf32>
    %58 = arith.addf %56, %57 : vector<128x8xf32>
    %59 = math.tanh %58 : vector<128x8xf32>
    %60 = vector.extract_strided_slice %59 {offsets = [0, 0], sizes = [32, 8], strides = [1, 1]} : vector<128x8xf32> to vector<32x8xf32>
    %cst_27 = arith.constant 5.000000e-01 : f32
    %61 = vector.broadcast %cst_27 : f32 to vector<32x8xf32>
    %62 = arith.mulf %61, %60 : vector<32x8xf32>
    %cst_28 = arith.constant 5.000000e-01 : f32
    %63 = vector.broadcast %cst_28 : f32 to vector<32x8xf32>
    %64 = arith.addf %62, %63 : vector<32x8xf32>
    %65 = vector.extract_strided_slice %59 {offsets = [32, 0], sizes = [32, 8], strides = [1, 1]} : vector<128x8xf32> to vector<32x8xf32>
    %cst_29 = arith.constant 5.000000e-01 : f32
    %66 = vector.broadcast %cst_29 : f32 to vector<32x8xf32>
    %67 = arith.mulf %66, %65 : vector<32x8xf32>
    %cst_30 = arith.constant 5.000000e-01 : f32
    %68 = vector.broadcast %cst_30 : f32 to vector<32x8xf32>
    %69 = arith.addf %67, %68 : vector<32x8xf32>
    %70 = vector.extract_strided_slice %59 {offsets = [64, 0], sizes = [32, 8], strides = [1, 1]} : vector<128x8xf32> to vector<32x8xf32>
    %71 = vector.extract_strided_slice %59 {offsets = [96, 0], sizes = [32, 8], strides = [1, 1]} : vector<128x8xf32> to vector<32x8xf32>
    %cst_31 = arith.constant 5.000000e-01 : f32
    %72 = vector.broadcast %cst_31 : f32 to vector<32x8xf32>
    %73 = arith.mulf %72, %71 : vector<32x8xf32>
    %cst_32 = arith.constant 5.000000e-01 : f32
    %74 = vector.broadcast %cst_32 : f32 to vector<32x8xf32>
    %75 = arith.addf %73, %74 : vector<32x8xf32>
    %76 = arith.mulf %69, %52 : vector<32x8xf32>
    %77 = arith.mulf %64, %70 : vector<32x8xf32>
    %78 = arith.addf %76, %77 : vector<32x8xf32>
    %79 = math.tanh %78 : vector<32x8xf32>
    %80 = arith.mulf %75, %79 : vector<32x8xf32>
    %c0_33 = arith.constant 0 : index
    %c3 = arith.constant 3 : index
    %c0_34 = arith.constant 0 : index
    %c0_35 = arith.constant 0 : index
    %81 = vector.load %arg1[%c0_33, %c3, %c0_34, %c0_35] : memref<1x8x128x8xf32, #tpu.memory_space<vmem>>, vector<1x1x128x8xf32>
    %82 = vector.shape_cast %81 : vector<1x1x128x8xf32> to vector<128x8xf32>
    %cst_36 = arith.constant dense<0.000000e+00> : vector<128x8xf32>
    %83 = tpu.matmul %0, %80, %cst_36 {dimension_numbers = #tpu.dot_dimension_numbers<[1], [0], [0], [1], [0, 0, 1, 1], [], []>} : vector<128x32xf32>, vector<32x8xf32>, vector<128x8xf32> -> vector<128x8xf32>
    %84 = arith.addf %82, %83 : vector<128x8xf32>
    %85 = math.tanh %84 : vector<128x8xf32>
    %86 = vector.extract_strided_slice %85 {offsets = [0, 0], sizes = [32, 8], strides = [1, 1]} : vector<128x8xf32> to vector<32x8xf32>
    %cst_37 = arith.constant 5.000000e-01 : f32
    %87 = vector.broadcast %cst_37 : f32 to vector<32x8xf32>
    %88 = arith.mulf %87, %86 : vector<32x8xf32>
    %cst_38 = arith.constant 5.000000e-01 : f32
    %89 = vector.broadcast %cst_38 : f32 to vector<32x8xf32>
    %90 = arith.addf %88, %89 : vector<32x8xf32>
    %91 = vector.extract_strided_slice %85 {offsets = [32, 0], sizes = [32, 8], strides = [1, 1]} : vector<128x8xf32> to vector<32x8xf32>
    %cst_39 = arith.constant 5.000000e-01 : f32
    %92 = vector.broadcast %cst_39 : f32 to vector<32x8xf32>
    %93 = arith.mulf %92, %91 : vector<32x8xf32>
    %cst_40 = arith.constant 5.000000e-01 : f32
    %94 = vector.broadcast %cst_40 : f32 to vector<32x8xf32>
    %95 = arith.addf %93, %94 : vector<32x8xf32>
    %96 = vector.extract_strided_slice %85 {offsets = [64, 0], sizes = [32, 8], strides = [1, 1]} : vector<128x8xf32> to vector<32x8xf32>
    %97 = vector.extract_strided_slice %85 {offsets = [96, 0], sizes = [32, 8], strides = [1, 1]} : vector<128x8xf32> to vector<32x8xf32>
    %cst_41 = arith.constant 5.000000e-01 : f32
    %98 = vector.broadcast %cst_41 : f32 to vector<32x8xf32>
    %99 = arith.mulf %98, %97 : vector<32x8xf32>
    %cst_42 = arith.constant 5.000000e-01 : f32
    %100 = vector.broadcast %cst_42 : f32 to vector<32x8xf32>
    %101 = arith.addf %99, %100 : vector<32x8xf32>
    %102 = arith.mulf %95, %78 : vector<32x8xf32>
    %103 = arith.mulf %90, %96 : vector<32x8xf32>
    %104 = arith.addf %102, %103 : vector<32x8xf32>
    %105 = math.tanh %104 : vector<32x8xf32>
    %106 = arith.mulf %101, %105 : vector<32x8xf32>
    %c0_43 = arith.constant 0 : index
    %c4 = arith.constant 4 : index
    %c0_44 = arith.constant 0 : index
    %c0_45 = arith.constant 0 : index
    %107 = vector.load %arg1[%c0_43, %c4, %c0_44, %c0_45] : memref<1x8x128x8xf32, #tpu.memory_space<vmem>>, vector<1x1x128x8xf32>
    %108 = vector.shape_cast %107 : vector<1x1x128x8xf32> to vector<128x8xf32>
    %cst_46 = arith.constant dense<0.000000e+00> : vector<128x8xf32>
    %109 = tpu.matmul %0, %106, %cst_46 {dimension_numbers = #tpu.dot_dimension_numbers<[1], [0], [0], [1], [0, 0, 1, 1], [], []>} : vector<128x32xf32>, vector<32x8xf32>, vector<128x8xf32> -> vector<128x8xf32>
    %110 = arith.addf %108, %109 : vector<128x8xf32>
    %111 = math.tanh %110 : vector<128x8xf32>
    %112 = vector.extract_strided_slice %111 {offsets = [0, 0], sizes = [32, 8], strides = [1, 1]} : vector<128x8xf32> to vector<32x8xf32>
    %cst_47 = arith.constant 5.000000e-01 : f32
    %113 = vector.broadcast %cst_47 : f32 to vector<32x8xf32>
    %114 = arith.mulf %113, %112 : vector<32x8xf32>
    %cst_48 = arith.constant 5.000000e-01 : f32
    %115 = vector.broadcast %cst_48 : f32 to vector<32x8xf32>
    %116 = arith.addf %114, %115 : vector<32x8xf32>
    %117 = vector.extract_strided_slice %111 {offsets = [32, 0], sizes = [32, 8], strides = [1, 1]} : vector<128x8xf32> to vector<32x8xf32>
    %cst_49 = arith.constant 5.000000e-01 : f32
    %118 = vector.broadcast %cst_49 : f32 to vector<32x8xf32>
    %119 = arith.mulf %118, %117 : vector<32x8xf32>
    %cst_50 = arith.constant 5.000000e-01 : f32
    %120 = vector.broadcast %cst_50 : f32 to vector<32x8xf32>
    %121 = arith.addf %119, %120 : vector<32x8xf32>
    %122 = vector.extract_strided_slice %111 {offsets = [64, 0], sizes = [32, 8], strides = [1, 1]} : vector<128x8xf32> to vector<32x8xf32>
    %123 = vector.extract_strided_slice %111 {offsets = [96, 0], sizes = [32, 8], strides = [1, 1]} : vector<128x8xf32> to vector<32x8xf32>
    %cst_51 = arith.constant 5.000000e-01 : f32
    %124 = vector.broadcast %cst_51 : f32 to vector<32x8xf32>
    %125 = arith.mulf %124, %123 : vector<32x8xf32>
    %cst_52 = arith.constant 5.000000e-01 : f32
    %126 = vector.broadcast %cst_52 : f32 to vector<32x8xf32>
    %127 = arith.addf %125, %126 : vector<32x8xf32>
    %128 = arith.mulf %121, %104 : vector<32x8xf32>
    %129 = arith.mulf %116, %122 : vector<32x8xf32>
    %130 = arith.addf %128, %129 : vector<32x8xf32>
    %131 = math.tanh %130 : vector<32x8xf32>
    %132 = arith.mulf %127, %131 : vector<32x8xf32>
    %c0_53 = arith.constant 0 : index
    %c5 = arith.constant 5 : index
    %c0_54 = arith.constant 0 : index
    %c0_55 = arith.constant 0 : index
    %133 = vector.load %arg1[%c0_53, %c5, %c0_54, %c0_55] : memref<1x8x128x8xf32, #tpu.memory_space<vmem>>, vector<1x1x128x8xf32>
    %134 = vector.shape_cast %133 : vector<1x1x128x8xf32> to vector<128x8xf32>
    %cst_56 = arith.constant dense<0.000000e+00> : vector<128x8xf32>
    %135 = tpu.matmul %0, %132, %cst_56 {dimension_numbers = #tpu.dot_dimension_numbers<[1], [0], [0], [1], [0, 0, 1, 1], [], []>} : vector<128x32xf32>, vector<32x8xf32>, vector<128x8xf32> -> vector<128x8xf32>
    %136 = arith.addf %134, %135 : vector<128x8xf32>
    %137 = math.tanh %136 : vector<128x8xf32>
    %138 = vector.extract_strided_slice %137 {offsets = [0, 0], sizes = [32, 8], strides = [1, 1]} : vector<128x8xf32> to vector<32x8xf32>
    %cst_57 = arith.constant 5.000000e-01 : f32
    %139 = vector.broadcast %cst_57 : f32 to vector<32x8xf32>
    %140 = arith.mulf %139, %138 : vector<32x8xf32>
    %cst_58 = arith.constant 5.000000e-01 : f32
    %141 = vector.broadcast %cst_58 : f32 to vector<32x8xf32>
    %142 = arith.addf %140, %141 : vector<32x8xf32>
    %143 = vector.extract_strided_slice %137 {offsets = [32, 0], sizes = [32, 8], strides = [1, 1]} : vector<128x8xf32> to vector<32x8xf32>
    %cst_59 = arith.constant 5.000000e-01 : f32
    %144 = vector.broadcast %cst_59 : f32 to vector<32x8xf32>
    %145 = arith.mulf %144, %143 : vector<32x8xf32>
    %cst_60 = arith.constant 5.000000e-01 : f32
    %146 = vector.broadcast %cst_60 : f32 to vector<32x8xf32>
    %147 = arith.addf %145, %146 : vector<32x8xf32>
    %148 = vector.extract_strided_slice %137 {offsets = [64, 0], sizes = [32, 8], strides = [1, 1]} : vector<128x8xf32> to vector<32x8xf32>
    %149 = vector.extract_strided_slice %137 {offsets = [96, 0], sizes = [32, 8], strides = [1, 1]} : vector<128x8xf32> to vector<32x8xf32>
    %cst_61 = arith.constant 5.000000e-01 : f32
    %150 = vector.broadcast %cst_61 : f32 to vector<32x8xf32>
    %151 = arith.mulf %150, %149 : vector<32x8xf32>
    %cst_62 = arith.constant 5.000000e-01 : f32
    %152 = vector.broadcast %cst_62 : f32 to vector<32x8xf32>
    %153 = arith.addf %151, %152 : vector<32x8xf32>
    %154 = arith.mulf %147, %130 : vector<32x8xf32>
    %155 = arith.mulf %142, %148 : vector<32x8xf32>
    %156 = arith.addf %154, %155 : vector<32x8xf32>
    %157 = math.tanh %156 : vector<32x8xf32>
    %158 = arith.mulf %153, %157 : vector<32x8xf32>
    %c0_63 = arith.constant 0 : index
    %c6 = arith.constant 6 : index
    %c0_64 = arith.constant 0 : index
    %c0_65 = arith.constant 0 : index
    %159 = vector.load %arg1[%c0_63, %c6, %c0_64, %c0_65] : memref<1x8x128x8xf32, #tpu.memory_space<vmem>>, vector<1x1x128x8xf32>
    %160 = vector.shape_cast %159 : vector<1x1x128x8xf32> to vector<128x8xf32>
    %cst_66 = arith.constant dense<0.000000e+00> : vector<128x8xf32>
    %161 = tpu.matmul %0, %158, %cst_66 {dimension_numbers = #tpu.dot_dimension_numbers<[1], [0], [0], [1], [0, 0, 1, 1], [], []>} : vector<128x32xf32>, vector<32x8xf32>, vector<128x8xf32> -> vector<128x8xf32>
    %162 = arith.addf %160, %161 : vector<128x8xf32>
    %163 = math.tanh %162 : vector<128x8xf32>
    %164 = vector.extract_strided_slice %163 {offsets = [0, 0], sizes = [32, 8], strides = [1, 1]} : vector<128x8xf32> to vector<32x8xf32>
    %cst_67 = arith.constant 5.000000e-01 : f32
    %165 = vector.broadcast %cst_67 : f32 to vector<32x8xf32>
    %166 = arith.mulf %165, %164 : vector<32x8xf32>
    %cst_68 = arith.constant 5.000000e-01 : f32
    %167 = vector.broadcast %cst_68 : f32 to vector<32x8xf32>
    %168 = arith.addf %166, %167 : vector<32x8xf32>
    %169 = vector.extract_strided_slice %163 {offsets = [32, 0], sizes = [32, 8], strides = [1, 1]} : vector<128x8xf32> to vector<32x8xf32>
    %cst_69 = arith.constant 5.000000e-01 : f32
    %170 = vector.broadcast %cst_69 : f32 to vector<32x8xf32>
    %171 = arith.mulf %170, %169 : vector<32x8xf32>
    %cst_70 = arith.constant 5.000000e-01 : f32
    %172 = vector.broadcast %cst_70 : f32 to vector<32x8xf32>
    %173 = arith.addf %171, %172 : vector<32x8xf32>
    %174 = vector.extract_strided_slice %163 {offsets = [64, 0], sizes = [32, 8], strides = [1, 1]} : vector<128x8xf32> to vector<32x8xf32>
    %175 = vector.extract_strided_slice %163 {offsets = [96, 0], sizes = [32, 8], strides = [1, 1]} : vector<128x8xf32> to vector<32x8xf32>
    %cst_71 = arith.constant 5.000000e-01 : f32
    %176 = vector.broadcast %cst_71 : f32 to vector<32x8xf32>
    %177 = arith.mulf %176, %175 : vector<32x8xf32>
    %cst_72 = arith.constant 5.000000e-01 : f32
    %178 = vector.broadcast %cst_72 : f32 to vector<32x8xf32>
    %179 = arith.addf %177, %178 : vector<32x8xf32>
    %180 = arith.mulf %173, %156 : vector<32x8xf32>
    %181 = arith.mulf %168, %174 : vector<32x8xf32>
    %182 = arith.addf %180, %181 : vector<32x8xf32>
    %183 = math.tanh %182 : vector<32x8xf32>
    %184 = arith.mulf %179, %183 : vector<32x8xf32>
    %c0_73 = arith.constant 0 : index
    %c7 = arith.constant 7 : index
    %c0_74 = arith.constant 0 : index
    %c0_75 = arith.constant 0 : index
    %185 = vector.load %arg1[%c0_73, %c7, %c0_74, %c0_75] : memref<1x8x128x8xf32, #tpu.memory_space<vmem>>, vector<1x1x128x8xf32>
    %186 = vector.shape_cast %185 : vector<1x1x128x8xf32> to vector<128x8xf32>
    %cst_76 = arith.constant dense<0.000000e+00> : vector<128x8xf32>
    %187 = tpu.matmul %0, %184, %cst_76 {dimension_numbers = #tpu.dot_dimension_numbers<[1], [0], [0], [1], [0, 0, 1, 1], [], []>} : vector<128x32xf32>, vector<32x8xf32>, vector<128x8xf32> -> vector<128x8xf32>
    %188 = arith.addf %186, %187 : vector<128x8xf32>
    %189 = math.tanh %188 : vector<128x8xf32>
    %190 = vector.extract_strided_slice %189 {offsets = [0, 0], sizes = [32, 8], strides = [1, 1]} : vector<128x8xf32> to vector<32x8xf32>
    %cst_77 = arith.constant 5.000000e-01 : f32
    %191 = vector.broadcast %cst_77 : f32 to vector<32x8xf32>
    %192 = arith.mulf %191, %190 : vector<32x8xf32>
    %cst_78 = arith.constant 5.000000e-01 : f32
    %193 = vector.broadcast %cst_78 : f32 to vector<32x8xf32>
    %194 = arith.addf %192, %193 : vector<32x8xf32>
    %195 = vector.extract_strided_slice %189 {offsets = [32, 0], sizes = [32, 8], strides = [1, 1]} : vector<128x8xf32> to vector<32x8xf32>
    %cst_79 = arith.constant 5.000000e-01 : f32
    %196 = vector.broadcast %cst_79 : f32 to vector<32x8xf32>
    %197 = arith.mulf %196, %195 : vector<32x8xf32>
    %cst_80 = arith.constant 5.000000e-01 : f32
    %198 = vector.broadcast %cst_80 : f32 to vector<32x8xf32>
    %199 = arith.addf %197, %198 : vector<32x8xf32>
    %200 = vector.extract_strided_slice %189 {offsets = [64, 0], sizes = [32, 8], strides = [1, 1]} : vector<128x8xf32> to vector<32x8xf32>
    %201 = vector.extract_strided_slice %189 {offsets = [96, 0], sizes = [32, 8], strides = [1, 1]} : vector<128x8xf32> to vector<32x8xf32>
    %cst_81 = arith.constant 5.000000e-01 : f32
    %202 = vector.broadcast %cst_81 : f32 to vector<32x8xf32>
    %203 = arith.mulf %202, %201 : vector<32x8xf32>
    %cst_82 = arith.constant 5.000000e-01 : f32
    %204 = vector.broadcast %cst_82 : f32 to vector<32x8xf32>
    %205 = arith.addf %203, %204 : vector<32x8xf32>
    %206 = arith.mulf %199, %182 : vector<32x8xf32>
    %207 = arith.mulf %194, %200 : vector<32x8xf32>
    %208 = arith.addf %206, %207 : vector<32x8xf32>
    %209 = math.tanh %208 : vector<32x8xf32>
    %210 = arith.mulf %205, %209 : vector<32x8xf32>
    %c0_83 = arith.constant 0 : index
    %c0_84 = arith.constant 0 : index
    %c0_85 = arith.constant 0 : index
    %211 = vector.load %arg2[%c0_83, %c0_84, %c0_85] : memref<1x128x8xf32, #tpu.memory_space<vmem>>, vector<1x128x8xf32>
    %212 = vector.shape_cast %211 : vector<1x128x8xf32> to vector<128x8xf32>
    %213 = math.tanh %212 : vector<128x8xf32>
    %214 = vector.extract_strided_slice %213 {offsets = [0, 0], sizes = [32, 8], strides = [1, 1]} : vector<128x8xf32> to vector<32x8xf32>
    %cst_86 = arith.constant 5.000000e-01 : f32
    %215 = vector.broadcast %cst_86 : f32 to vector<32x8xf32>
    %216 = arith.mulf %215, %214 : vector<32x8xf32>
    %cst_87 = arith.constant 5.000000e-01 : f32
    %217 = vector.broadcast %cst_87 : f32 to vector<32x8xf32>
    %218 = arith.addf %216, %217 : vector<32x8xf32>
    %219 = vector.extract_strided_slice %213 {offsets = [64, 0], sizes = [32, 8], strides = [1, 1]} : vector<128x8xf32> to vector<32x8xf32>
    %220 = vector.extract_strided_slice %213 {offsets = [96, 0], sizes = [32, 8], strides = [1, 1]} : vector<128x8xf32> to vector<32x8xf32>
    %cst_88 = arith.constant 5.000000e-01 : f32
    %221 = vector.broadcast %cst_88 : f32 to vector<32x8xf32>
    %222 = arith.mulf %221, %220 : vector<32x8xf32>
    %cst_89 = arith.constant 5.000000e-01 : f32
    %223 = vector.broadcast %cst_89 : f32 to vector<32x8xf32>
    %224 = arith.addf %222, %223 : vector<32x8xf32>
    %225 = arith.mulf %218, %219 : vector<32x8xf32>
    %226 = math.tanh %225 : vector<32x8xf32>
    %227 = arith.mulf %224, %226 : vector<32x8xf32>
    %c0_90 = arith.constant 0 : index
    %c0_91 = arith.constant 0 : index
    %c0_92 = arith.constant 0 : index
    %228 = vector.load %arg3[%c0_90, %c0_91, %c0_92] : memref<1x1x8xf32, #tpu.memory_space<vmem>>, vector<1x1x8xf32>
    %229 = vector.shape_cast %228 : vector<1x1x8xf32> to vector<1x8xf32>
    %cst_93 = arith.constant 0.000000e+00 : f32
    %230 = vector.broadcast %cst_93 : f32 to vector<32x8xf32>
    %231 = arith.maximumf %210, %230 : vector<32x8xf32>
    %232 = vector.broadcast %229 : vector<1x8xf32> to vector<32x8xf32>
    %233 = arith.mulf %231, %232 : vector<32x8xf32>
    %cst_94 = arith.constant 0.000000e+00 : f32
    %234 = vector.broadcast %cst_94 : f32 to vector<32x8xf32>
    %235 = arith.maximumf %227, %234 : vector<32x8xf32>
    %236 = vector.broadcast %229 : vector<1x8xf32> to vector<32x8xf32>
    %237 = arith.mulf %235, %236 : vector<32x8xf32>
    %c0_95 = arith.constant 0 : index
    %c0_96 = arith.constant 0 : index
    %238 = vector.load %arg5[%c0_95, %c0_96] : memref<5x32xf32, #tpu.memory_space<vmem>>, vector<5x32xf32>
    %cst_97 = arith.constant dense<0.000000e+00> : vector<5x8xf32>
    %239 = tpu.matmul %238, %233, %cst_97 {dimension_numbers = #tpu.dot_dimension_numbers<[1], [0], [0], [1], [0, 0, 1, 1], [], []>} : vector<5x32xf32>, vector<32x8xf32>, vector<5x8xf32> -> vector<5x8xf32>
    %c0_98 = arith.constant 0 : index
    %c0_99 = arith.constant 0 : index
    %240 = vector.load %arg6[%c0_98, %c0_99] : memref<5x32xf32, #tpu.memory_space<vmem>>, vector<5x32xf32>
    %cst_100 = arith.constant dense<0.000000e+00> : vector<5x8xf32>
    %241 = tpu.matmul %240, %237, %cst_100 {dimension_numbers = #tpu.dot_dimension_numbers<[1], [0], [0], [1], [0, 0, 1, 1], [], []>} : vector<5x32xf32>, vector<32x8xf32>, vector<5x8xf32> -> vector<5x8xf32>
    %242 = arith.addf %239, %241 : vector<5x8xf32>
    %c0_101 = arith.constant 0 : index
    %c0_102 = arith.constant 0 : index
    %243 = vector.load %arg7[%c0_101, %c0_102] : memref<5x1xf32, #tpu.memory_space<vmem>>, vector<5x1xf32>
    %244 = vector.broadcast %243 : vector<5x1xf32> to vector<5x8xf32>
    %245 = arith.addf %242, %244 : vector<5x8xf32>
    %c0_103 = arith.constant 0 : index
    %c0_104 = arith.constant 0 : index
    %c0_105 = arith.constant 0 : index
    %246 = vector.load %arg8[%c0_103, %c0_104, %c0_105] : memref<1x5x8xf32, #tpu.memory_space<vmem>>, vector<1x5x8xf32>
    %247 = vector.shape_cast %246 : vector<1x5x8xf32> to vector<5x8xf32>
    %248 = vector.shape_cast %245 : vector<5x8xf32> to vector<1x5x8xf32>
    tpu.vector_store %arg8[%c0_103, %c0_104, %c0_105], %248 {strides = array<i32>} : memref<1x5x8xf32, #tpu.memory_space<vmem>>, vector<1x5x8xf32>,
    return
  }
  func.func @transform_0(%arg0: i32) -> (i32, i32, i32, i32) {
    %c0_i32 = arith.constant 0 : i32
    %c0_i32_0 = arith.constant 0 : i32
    %c0_i32_1 = arith.constant 0 : i32
    %c0_i32_2 = arith.constant 0 : i32
    return %arg0, %c0_i32, %c0_i32_0, %c0_i32_1 : i32, i32, i32, i32
  }
  func.func @transform_1(%arg0: i32) -> (i32, i32, i32) {
    %c0_i32 = arith.constant 0 : i32
    %c0_i32_0 = arith.constant 0 : i32
    %c0_i32_1 = arith.constant 0 : i32
    return %arg0, %c0_i32, %c0_i32_0 : i32, i32, i32
  }
  func.func @transform_2(%arg0: i32) -> (i32, i32, i32) {
    %c0_i32 = arith.constant 0 : i32
    %c0_i32_0 = arith.constant 0 : i32
    %c0_i32_1 = arith.constant 0 : i32
    return %arg0, %c0_i32, %c0_i32_0 : i32, i32, i32
  }
  func.func @transform_3(%arg0: i32) -> (i32, i32) {
    %c0_i32 = arith.constant 0 : i32
    %c0_i32_0 = arith.constant 0 : i32
    %c0_i32_1 = arith.constant 0 : i32
    return %c0_i32, %c0_i32_0 : i32, i32
  }
  func.func @transform_4(%arg0: i32) -> (i32, i32) {
    %c0_i32 = arith.constant 0 : i32
    %c0_i32_0 = arith.constant 0 : i32
    %c0_i32_1 = arith.constant 0 : i32
    return %c0_i32, %c0_i32_0 : i32, i32
  }
  func.func @transform_5(%arg0: i32) -> (i32, i32) {
    %c0_i32 = arith.constant 0 : i32
    %c0_i32_0 = arith.constant 0 : i32
    %c0_i32_1 = arith.constant 0 : i32
    return %c0_i32, %c0_i32_0 : i32, i32
  }
  func.func @transform_6(%arg0: i32) -> (i32, i32) {
    %c0_i32 = arith.constant 0 : i32
    %c0_i32_0 = arith.constant 0 : i32
    %c0_i32_1 = arith.constant 0 : i32
    return %c0_i32, %c0_i32_0 : i32, i32
  }
  func.func @transform_7(%arg0: i32) -> (i32, i32, i32) {
    %c0_i32 = arith.constant 0 : i32
    %c0_i32_0 = arith.constant 0 : i32
    %c0_i32_1 = arith.constant 0 : i32
    return %arg0, %c0_i32, %c0_i32_0 : i32, i32, i32
  }
}

</mosaic_0001>

<llo_original>
// kernel: bilstm_cnn_forward.1
$region0: #{bilstm_cnn_forward.1}
  #allocation0 [shape = 'u32[]', space=smem, size = 0x4, offset = 0x4, fixed_abs, tag = 'smem constant byte address 0x4 - core index']
  #allocation1 [shape = 'u32[144,128]{1,0:T(1,128)}', space=vmem, size = 0x12000, scoped, tag = 'internal scratch']
  %s0 = inlined_call_operand.vmem [shape: f32[1,8,128,8], index: 0, kind: input, shape index: {}]
  %s1 = inlined_call_operand.vmem [shape: f32[1,128,8], index: 1, kind: input, shape index: {}]
  %s2 = inlined_call_operand.vmem [shape: f32[1,1,8], index: 2, kind: input, shape index: {}]
  %s3 = inlined_call_operand.vmem [shape: f32[128,32], index: 3, kind: input, shape index: {}]
  %s4 = inlined_call_operand.vmem [shape: f32[5,32], index: 4, kind: input, shape index: {}]
  %s5 = inlined_call_operand.vmem [shape: f32[5,32], index: 5, kind: input, shape index: {}]
  %s6 = inlined_call_operand.vmem [shape: f32[5,1], index: 6, kind: input, shape index: {}]
  %s7 = inlined_call_operand.vmem [shape: f32[1,5,8], index: 7, kind: output, shape index: {}]
  %s8 = sld [smem:[#allocation0]]
  $region38: #{bilstm_cnn_forward.1} parent=0
    _
  %s10 = ssub.s32 1, %s8
  %s11 = scalar_select 0, %s10, %s8
  // Predicated region
  $region2: #{bilstm_cnn_forward.1} parent=0 // pred_check
    _
  $region3: #{bilstm_cnn_forward.1} parent=0 // pred_check_branch
    %13 = sbr.rel (0) target = $region5
  $region4: #{bilstm_cnn_forward.1} parent=0 // pred_region
    _
  $region5: #{bilstm_cnn_forward.1} parent=0 // pred_fallthru
    _
  // Predicated region
  $region6: #{bilstm_cnn_forward.1} parent=0 // pred_check
    _
  $region7: #{bilstm_cnn_forward.1} parent=0 // pred_check_branch
    %15 = sbr.rel (0) target = $region9
  $region8: #{bilstm_cnn_forward.1} parent=0 // pred_region
    _
  $region9: #{bilstm_cnn_forward.1} parent=0 // pred_fallthru
    _
  // Predicated region
  $region10: #{bilstm_cnn_forward.1} parent=0 // pred_check
    _
  $region11: #{bilstm_cnn_forward.1} parent=0 // pred_check_branch
    %17 = sbr.rel (0) target = $region13
  $region12: #{bilstm_cnn_forward.1} parent=0 // pred_region
    _
  $region13: #{bilstm_cnn_forward.1} parent=0 // pred_fallthru
    _
  // Predicated region
  $region14: #{bilstm_cnn_forward.1} parent=0 // pred_check
    _
  $region15: #{bilstm_cnn_forward.1} parent=0 // pred_check_branch
    %19 = sbr.rel (0) target = $region17
  $region16: #{bilstm_cnn_forward.1} parent=0 // pred_region
    _
  $region17: #{bilstm_cnn_forward.1} parent=0 // pred_fallthru
    _
  // Predicated region
  $region18: #{bilstm_cnn_forward.1} parent=0 // pred_check
    _
  $region19: #{bilstm_cnn_forward.1} parent=0 // pred_check_branch
    %21 = sbr.rel (0) target = $region21
  $region20: #{bilstm_cnn_forward.1} parent=0 // pred_region
    _
  $region21: #{bilstm_cnn_forward.1} parent=0 // pred_fallthru
    _
  // Predicated region
  $region22: #{bilstm_cnn_forward.1} parent=0 // pred_check
    _
  $region23: #{bilstm_cnn_forward.1} parent=0 // pred_check_branch
    %23 = sbr.rel (0) target = $region25
  $region24: #{bilstm_cnn_forward.1} parent=0 // pred_region
    _
  $region25: #{bilstm_cnn_forward.1} parent=0 // pred_fallthru
    _
  // Predicated region
  $region26: #{bilstm_cnn_forward.1} parent=0 // pred_check
    _
  $region27: #{bilstm_cnn_forward.1} parent=0 // pred_check_branch
    %25 = sbr.rel (0) target = $region29
  $region28: #{bilstm_cnn_forward.1} parent=0 // pred_region
    _
  $region29: #{bilstm_cnn_forward.1} parent=0 // pred_fallthru
    _
  %v26 = vld [vmem:[%s3] sm:$0xff]
  %v27 = vld [vmem:[%s3 + $0x8] sm:$0xff]
  %v28 = vld [vmem:[%s3 + $0x10] sm:$0xff]
  %v29 = vld [vmem:[%s3 + $0x18] sm:$0xff]
  %v30 = vld [vmem:[%s3 + $0x20] sm:$0xff]
  %v31 = vld [vmem:[%s3 + $0x28] sm:$0xff]
  %v32 = vld [vmem:[%s3 + $0x30] sm:$0xff]
  %v33 = vld [vmem:[%s3 + $0x38] sm:$0xff]
  %v34 = vld [vmem:[%s3 + $0x40] sm:$0xff]
  %v35 = vld [vmem:[%s3 + $0x48] sm:$0xff]
  %v36 = vld [vmem:[%s3 + $0x50] sm:$0xff]
  %v37 = vld [vmem:[%s3 + $0x58] sm:$0xff]
  %v38 = vld [vmem:[%s3 + $0x60] sm:$0xff]
  %v39 = vld [vmem:[%s3 + $0x68] sm:$0xff]
  %v40 = vld [vmem:[%s3 + $0x70] sm:$0xff]
  %v41 = vld [vmem:[%s3 + $0x78] sm:$0xff]
  %v42 = vld [vmem:[%s0] sm:$0xff]
  %v43 = vld [vmem:[%s0 + $0x8] sm:$0xff]
  %v44 = vld [vmem:[%s0 + $0x10] sm:$0xff]
  %v45 = vld [vmem:[%s0 + $0x18] sm:$0xff]
  %v46 = vld [vmem:[%s0 + $0x20] sm:$0xff]
  %v47 = vld [vmem:[%s0 + $0x28] sm:$0xff]
  %v48 = vld [vmem:[%s0 + $0x30] sm:$0xff]
  %v49 = vld [vmem:[%s0 + $0x38] sm:$0xff]
  %v50 = vld [vmem:[%s0 + $0x40] sm:$0xff]
  %v51 = vld [vmem:[%s0 + $0x48] sm:$0xff]
  %v52 = vld [vmem:[%s0 + $0x50] sm:$0xff]
  %v53 = vld [vmem:[%s0 + $0x58] sm:$0xff]
  %v54 = vld [vmem:[%s0 + $0x60] sm:$0xff]
  %v55 = vld [vmem:[%s0 + $0x68] sm:$0xff]
  %v56 = vld [vmem:[%s0 + $0x70] sm:$0xff]
  %v57 = vld [vmem:[%s0 + $0x78] sm:$0xff]
  %vm58 = vcmask 261120
  %v60 = vsel %vm58, %v26, 0
  %v63 = vsel %vm58, %v27, 0
  %v66 = vsel %vm58, %v28, 0
  %v69 = vsel %vm58, %v29, 0
  %v72 = vsel %vm58, %v30, 0
  %v75 = vsel %vm58, %v31, 0
  %v78 = vsel %vm58, %v32, 0
  %v81 = vsel %vm58, %v33, 0
  %v84 = vsel %vm58, %v34, 0
  %v87 = vsel %vm58, %v35, 0
  %v90 = vsel %vm58, %v36, 0
  %v93 = vsel %vm58, %v37, 0
  %v96 = vsel %vm58, %v38, 0
  %v99 = vsel %vm58, %v39, 0
  %v102 = vsel %vm58, %v40, 0
  %v105 = vsel %vm58, %v41, 0
  %107 = vmatprep.subr.mxu0 0.0
  %108 = vmatpush1.msra.mxu0 0.0
  %109 = vmatprep.subr.mxu0 0.0
  %110 = vmatpush1.msra.mxu0 0.0
  %111 = vmatprep.subr.mxu0 0.0
  %112 = vmatpush1.msra.mxu0 0.0
  %113 = vmatprep.subr.mxu0 0.0
  %114 = vmatpush1.msra.mxu0 0.0
  %115 = vmatprep.subr.mxu0 0.0
  %116 = vmatpush1.msra.mxu0 0.0
  %117 = vmatprep.subr.mxu0 0.0
  %118 = vmatpush1.msra.mxu0 0.0
  %119 = vmatprep.subr.mxu0 0.0
  %120 = vmatpush1.msra.mxu0 0.0
  %121 = vmatprep.subr.mxu0 0.0
  %122 = vmatpush1.msra.mxu0 0.0
  %123 = vmatprep.subr.mxu0 0.0
  %124 = vmatpush1.msra.mxu0 0.0
  %125 = vmatprep.subr.mxu0 0.0
  %126 = vmatpush1.msra.mxu0 0.0
  %127 = vmatprep.subr.mxu0 0.0
  %128 = vmatpush1.msra.mxu0 0.0
  %129 = vmatprep.subr.mxu0 0.0
  %130 = vmatpush1.msra.mxu0 0.0
  %131 = vmatprep.subr.mxu0 0.0
  %132 = vmatpush1.msra.mxu0 0.0
  %133 = vmatprep.subr.mxu0 0.0
  %134 = vmatpush1.msra.mxu0 0.0
  %135 = vmatprep.subr.mxu0 0.0
  %136 = vmatpush1.msra.mxu0 0.0
  %137 = vmatprep.subr.mxu0 0.0
  %138 = vmatpush1.msra.mxu0 0.0
  %139 = vmatprep.subr.mxu0 0.0
  %140 = vmatpush1.msra.mxu0 0.0
  %141 = vmatprep.subr.mxu0 0.0
  %142 = vmatpush1.msra.mxu0 0.0
  %143 = vmatprep.subr.mxu0 0.0
  %144 = vmatpush1.msra.mxu0 0.0
  %145 = vmatprep.subr.mxu0 0.0
  %146 = vmatpush1.msra.mxu0 0.0
  %147 = vmatprep.subr.mxu0 0.0
  %148 = vmatpush1.msra.mxu0 0.0
  %149 = vmatprep.subr.mxu0 0.0
  %150 = vmatpush1.msra.mxu0 0.0
  %151 = vmatprep.subr.mxu0 0.0
  %152 = vmatpush1.msra.mxu0 0.0
  %153 = vmatprep.subr.mxu0 0.0
  %154 = vmatpush1.msra.mxu0 0.0
  %155 = vmatprep.subr.mxu0 0.0
  %156 = vmatpush1.msra.mxu0 0.0
  %157 = vmatprep.subr.mxu0 0.0
  %158 = vmatpush1.msra.mxu0 0.0
  %159 = vmatprep.subr.mxu0 0.0
  %160 = vmatpush1.msra.mxu0 0.0
  %161 = vmatprep.subr.mxu0 0.0
  %162 = vmatpush1.msra.mxu0 0.0
  %163 = vmatprep.subr.mxu0 0.0
  %164 = vmatpush1.msra.mxu0 0.0
  %165 = vmatprep.subr.mxu0 0.0
  %166 = vmatpush1.msra.mxu0 0.0
  %167 = vmatprep.subr.mxu0 0.0
  %168 = vmatpush1.msra.mxu0 0.0
  %169 = vmatprep.subr.mxu0 0.0
  %170 = vmatpush1.msra.mxu0 0.0
  %171 = vmatprep.mubr.f32.mxu0 0.0
  %172 = vmatmul.mubr.f32.gmra.mrb[0].mxu0 %v60
  %v173 = vpop.f32.mrb[0].mxu0
  %v174 = vadd.f32 0.0, %v173
  %v175 = vpop.f32.mrb[0].mxu0
  %176 = vmatprep.mubr.f32.mxu0 0.0
  %177 = vmatmul.mubr.f32.gmra.mrb[0].mxu0 %v63
  %v178 = vpop.f32.mrb[0].mxu0
  %v179 = vadd.f32 0.0, %v178
  %v180 = vpop.f32.mrb[0].mxu0
  %181 = vmatprep.mubr.f32.mxu0 0.0
  %182 = vmatmul.mubr.f32.gmra.mrb[0].mxu0 %v66
  %v183 = vpop.f32.mrb[0].mxu0
  %v184 = vadd.f32 0.0, %v183
  %v185 = vpop.f32.mrb[0].mxu0
  %186 = vmatprep.mubr.f32.mxu0 0.0
  %187 = vmatmul.mubr.f32.gmra.mrb[0].mxu0 %v69
  %v188 = vpop.f32.mrb[0].mxu0
  %v189 = vadd.f32 0.0, %v188
  %v190 = vpop.f32.mrb[0].mxu0
  %191 = vmatprep.mubr.f32.mxu0 0.0
  %192 = vmatmul.mubr.f32.gmra.mrb[0].mxu0 %v72
  %v193 = vpop.f32.mrb[0].mxu0
  %v194 = vadd.f32 0.0, %v193
  %v195 = vpop.f32.mrb[0].mxu0
  %196 = vmatprep.mubr.f32.mxu0 0.0
  %197 = vmatmul.mubr.f32.gmra.mrb[0].mxu0 %v75
  %v198 = vpop.f32.mrb[0].mxu0
  %v199 = vadd.f32 0.0, %v198
  %v200 = vpop.f32.mrb[0].mxu0
  %201 = vmatprep.mubr.f32.mxu0 0.0
  %202 = vmatmul.mubr.f32.gmra.mrb[0].mxu0 %v78
  %v203 = vpop.f32.mrb[0].mxu0
  %v204 = vadd.f32 0.0, %v203
  %v205 = vpop.f32.mrb[0].mxu0
  %206 = vmatprep.mubr.f32.mxu0 0.0
  %207 = vmatmul.mubr.f32.gmra.mrb[0].mxu0 %v81
  %v208 = vpop.f32.mrb[0].mxu0
  %v209 = vadd.f32 0.0, %v208
  %v210 = vpop.f32.mrb[0].mxu0
  %211 = vmatprep.mubr.f32.mxu0 0.0
  %212 = vmatmul.mubr.f32.gmra.mrb[0].mxu0 %v84
  %v213 = vpop.f32.mrb[0].mxu0
  %v214 = vadd.f32 0.0, %v213
  %v215 = vpop.f32.mrb[0].mxu0
  %216 = vmatprep.mubr.f32.mxu0 0.0
  %217 = vmatmul.mubr.f32.gmra.mrb[0].mxu0 %v87
  %v218 = vpop.f32.mrb[0].mxu0
  %v219 = vadd.f32 0.0, %v218
  %v220 = vpop.f32.mrb[0].mxu0
  %221 = vmatprep.mubr.f32.mxu0 0.0
  %222 = vmatmul.mubr.f32.gmra.mrb[0].mxu0 %v90
  %v223 = vpop.f32.mrb[0].mxu0
  %v224 = vadd.f32 0.0, %v223
  %v225 = vpop.f32.mrb[0].mxu0
  %226 = vmatprep.mubr.f32.mxu0 0.0
  %227 = vmatmul.mubr.f32.gmra.mrb[0].mxu0 %v93
  %v228 = vpop.f32.mrb[0].mxu0
  %v229 = vadd.f32 0.0, %v228
  %v230 = vpop.f32.mrb[0].mxu0
  %231 = vmatprep.mubr.f32.mxu0 0.0
  %232 = vmatmul.mubr.f32.gmra.mrb[0].mxu0 %v96
  %v233 = vpop.f32.mrb[0].mxu0
  %v234 = vadd.f32 0.0, %v233
  %v235 = vpop.f32.mrb[0].mxu0
  %236 = vmatprep.mubr.f32.mxu0 0.0
  %237 = vmatmul.mubr.f32.gmra.mrb[0].mxu0 %v99
  %v238 = vpop.f32.mrb[0].mxu0
  %v239 = vadd.f32 0.0, %v238
  %v240 = vpop.f32.mrb[0].mxu0
  %241 = vmatprep.mubr.f32.mxu0 0.0
  %242 = vmatmul.mubr.f32.gmra.mrb[0].mxu0 %v102
  %v243 = vpop.f32.mrb[0].mxu0
  %v244 = vadd.f32 0.0, %v243
  %v245 = vpop.f32.mrb[0].mxu0
  %246 = vmatprep.mubr.f32.mxu0 0.0
  %247 = vmatmul.mubr.f32.gmra.mrb[0].mxu0 %v105
  %v248 = vpop.f32.mrb[0].mxu0
  %v249 = vadd.f32 0.0, %v248
  %v250 = vpop.f32.mrb[0].mxu0
  %251 = vdwg.mxu0
  %v252 = vadd.f32 %v42, %v174
  %v253 = vadd.f32 %v43, %v179
  %v254 = vadd.f32 %v44, %v184
  %v255 = vadd.f32 %v45, %v189
  %v256 = vadd.f32 %v46, %v194
  %v257 = vadd.f32 %v47, %v199
  %v258 = vadd.f32 %v48, %v204
  %v259 = vadd.f32 %v49, %v209
  %v260 = vadd.f32 %v50, %v214
  %v261 = vadd.f32 %v51, %v219
  %v262 = vadd.f32 %v52, %v224
  %v263 = vadd.f32 %v53, %v229
  %v264 = vadd.f32 %v54, %v234
  %v265 = vadd.f32 %v55, %v239
  %v266 = vadd.f32 %v56, %v244
  %v267 = vadd.f32 %v57, %v249
  %v268 = vtanh.pop %v252
  %v269 = vtanh.pop %v253
  %v270 = vtanh.pop %v254
  %v271 = vtanh.pop %v255
  %v272 = vtanh.pop %v256
  %v273 = vtanh.pop %v257
  %v274 = vtanh.pop %v258
  %v275 = vtanh.pop %v259
  %v276 = vtanh.pop %v260
  %v277 = vtanh.pop %v261
  %v278 = vtanh.pop %v262
  %v279 = vtanh.pop %v263
  %v280 = vtanh.pop %v264
  %v281 = vtanh.pop %v265
  %v282 = vtanh.pop %v266
  %v283 = vtanh.pop %v267
  %v284 = vmul.f32 %v268, 0.5
  %v285 = vmul.f32 %v269, 0.5
  %v286 = vmul.f32 %v270, 0.5
  %v287 = vmul.f32 %v271, 0.5
  %v288 = vadd.f32 %v284, 0.5
  %v289 = vadd.f32 %v285, 0.5
  %v290 = vadd.f32 %v286, 0.5
  %v291 = vadd.f32 %v287, 0.5
  %v292 = vmul.f32 %v272, 0.5
  %v293 = vmul.f32 %v273, 0.5
  %v294 = vmul.f32 %v274, 0.5
  %v295 = vmul.f32 %v275, 0.5
  %v296 = vadd.f32 %v292, 0.5
  %v297 = vadd.f32 %v293, 0.5
  %v298 = vadd.f32 %v294, 0.5
  %v299 = vadd.f32 %v295, 0.5
  %v300 = vmul.f32 %v280, 0.5
  %v301 = vmul.f32 %v281, 0.5
  %v302 = vmul.f32 %v282, 0.5
  %v303 = vmul.f32 %v283, 0.5
  %v304 = vadd.f32 %v300, 0.5
  %v305 = vadd.f32 %v301, 0.5
  %v306 = vadd.f32 %v302, 0.5
  %v307 = vadd.f32 %v303, 0.5
  %v308 = vmul.f32 %v296, 0.0
  %v309 = vmul.f32 %v297, 0.0
  %v310 = vmul.f32 %v298, 0.0
  %v311 = vmul.f32 %v299, 0.0
  %v312 = vmul.f32 %v288, %v276
  %v313 = vmul.f32 %v289, %v277
  %v314 = vmul.f32 %v290, %v278
  %v315 = vmul.f32 %v291, %v279
  %v316 = vadd.f32 %v308, %v312
  %v317 = vadd.f32 %v309, %v313
  %v318 = vadd.f32 %v310, %v314
  %v319 = vadd.f32 %v311, %v315
  %v320 = vtanh.pop %v316
  %v321 = vtanh.pop %v317
  %v322 = vtanh.pop %v318
  %v323 = vtanh.pop %v319
  %v324 = vmul.f32 %v304, %v320
  %v325 = vmul.f32 %v305, %v321
  %v326 = vmul.f32 %v306, %v322
  %v327 = vmul.f32 %v307, %v323
  %s328 = scalar_lea.vmem %s0, 128
  %v329 = vld [vmem:[%s328] sm:$0xff]
  %v330 = vld [vmem:[%s328 + $0x8] sm:$0xff]
  %v331 = vld [vmem:[%s328 + $0x10] sm:$0xff]
  %v332 = vld [vmem:[%s328 + $0x18] sm:$0xff]
  %v333 = vld [vmem:[%s328 + $0x20] sm:$0xff]
  %v334 = vld [vmem:[%s328 + $0x28] sm:$0xff]
  %v335 = vld [vmem:[%s328 + $0x30] sm:$0xff]
  %v336 = vld [vmem:[%s328 + $0x38] sm:$0xff]
  %v337 = vld [vmem:[%s328 + $0x40] sm:$0xff]
  %v338 = vld [vmem:[%s328 + $0x48] sm:$0xff]
  %v339 = vld [vmem:[%s328 + $0x50] sm:$0xff]
  %v340 = vld [vmem:[%s328 + $0x58] sm:$0xff]
  %v341 = vld [vmem:[%s328 + $0x60] sm:$0xff]
  %v342 = vld [vmem:[%s328 + $0x68] sm:$0xff]
  %v343 = vld [vmem:[%s328 + $0x70] sm:$0xff]
  %v344 = vld [vmem:[%s328 + $0x78] sm:$0xff]
  %345 = vmatprep.subr.mxu0 0.0
  %346 = vmatpush1.msra.mxu0 %v324
  %347 = vmatprep.subr.mxu0 0.0
  %348 = vmatpush1.msra.mxu0 %v325
  %349 = vmatprep.subr.mxu0 0.0
  %350 = vmatpush1.msra.mxu0 %v326
  %351 = vmatprep.subr.mxu0 0.0
  %352 = vmatpush1.msra.mxu0 %v327
  %353 = vmatprep.subr.mxu0 0.0
  %354 = vmatpush1.msra.mxu0 0.0
  %355 = vmatprep.subr.mxu0 0.0
  %356 = vmatpush1.msra.mxu0 0.0
  %357 = vmatprep.subr.mxu0 0.0
  %358 = vmatpush1.msra.mxu0 0.0
  %359 = vmatprep.subr.mxu0 0.0
  %360 = vmatpush1.msra.mxu0 0.0
  %361 = vmatprep.subr.mxu0 0.0
  %362 = vmatpush1.msra.mxu0 0.0
  %363 = vmatprep.subr.mxu0 0.0
  %364 = vmatpush1.msra.mxu0 0.0
  %365 = vmatprep.subr.mxu0 0.0
  %366 = vmatpush1.msra.mxu0 0.0
  %367 = vmatprep.subr.mxu0 0.0
  %368 = vmatpush1.msra.mxu0 0.0
  %369 = vmatprep.subr.mxu0 0.0
  %370 = vmatpush1.msra.mxu0 0.0
  %371 = vmatprep.subr.mxu0 0.0
  %372 = vmatpush1.msra.mxu0 0.0
  %373 = vmatprep.subr.mxu0 0.0
  %374 = vmatpush1.msra.mxu0 0.0
  %375 = vmatprep.subr.mxu0 0.0
  %376 = vmatpush1.msra.mxu0 0.0
  %377 = vmatprep.subr.mxu0 0.0
  %378 = vmatpush1.msra.mxu0 0.0
  %379 = vmatprep.subr.mxu0 0.0
  %380 = vmatpush1.msra.mxu0 0.0
  %381 = vmatprep.subr.mxu0 0.0
  %382 = vmatpush1.msra.mxu0 0.0
  %383 = vmatprep.subr.mxu0 0.0
  %384 = vmatpush1.msra.mxu0 0.0
  %385 = vmatprep.subr.mxu0 0.0
  %386 = vmatpush1.msra.mxu0 0.0
  %387 = vmatprep.subr.mxu0 0.0
  %388 = vmatpush1.msra.mxu0 0.0
  %389 = vmatprep.subr.mxu0 0.0
  %390 = vmatpush1.msra.mxu0 0.0
  %391 = vmatprep.subr.mxu0 0.0
  %392 = vmatpush1.msra.mxu0 0.0
  %393 = vmatprep.subr.mxu0 0.0
  %394 = vmatpush1.msra.mxu0 0.0
  %395 = vmatprep.subr.mxu0 0.0
  %396 = vmatpush1.msra.mxu0 0.0
  %397 = vmatprep.subr.mxu0 0.0
  %398 = vmatpush1.msra.mxu0 0.0
  %399 = vmatprep.subr.mxu0 0.0
  %400 = vmatpush1.msra.mxu0 0.0
  %401 = vmatprep.subr.mxu0 0.0
  %402 = vmatpush1.msra.mxu0 0.0
  %403 = vmatprep.subr.mxu0 0.0
  %404 = vmatpush1.msra.mxu0 0.0
  %405 = vmatprep.subr.mxu0 0.0
  %406 = vmatpush1.msra.mxu0 0.0
  %407 = vmatprep.subr.mxu0 0.0
  %408 = vmatpush1.msra.mxu0 0.0
  %409 = vmatprep.mubr.f32.mxu0 0.0
  %410 = vmatmul.mubr.f32.gmra.mrb[0].mxu0 %v60
  %v411 = vpop.f32.mrb[0].mxu0
  %v412 = vadd.f32 0.0, %v411
  %v413 = vpop.f32.mrb[0].mxu0
  %414 = vmatprep.mubr.f32.mxu0 0.0
  %415 = vmatmul.mubr.f32.gmra.mrb[0].mxu0 %v63
  %v416 = vpop.f32.mrb[0].mxu0
  %v417 = vadd.f32 0.0, %v416
  %v418 = vpop.f32.mrb[0].mxu0
  %419 = vmatprep.mubr.f32.mxu0 0.0
  %420 = vmatmul.mubr.f32.gmra.mrb[0].mxu0 %v66
  %v421 = vpop.f32.mrb[0].mxu0
  %v422 = vadd.f32 0.0, %v421
  %v423 = vpop.f32.mrb[0].mxu0
  %424 = vmatprep.mubr.f32.mxu0 0.0
  %425 = vmatmul.mubr.f32.gmra.mrb[0].mxu0 %v69
  %v426 = vpop.f32.mrb[0].mxu0
  %v427 = vadd.f32 0.0, %v426
  %v428 = vpop.f32.mrb[0].mxu0
  %429 = vmatprep.mubr.f32.mxu0 0.0
  %430 = vmatmul.mubr.f32.gmra.mrb[0].mxu0 %v72
  %v431 = vpop.f32.mrb[0].mxu0
  %v432 = vadd.f32 0.0, %v431
  %v433 = vpop.f32.mrb[0].mxu0
  %434 = vmatprep.mubr.f32.mxu0 0.0
  %435 = vmatmul.mubr.f32.gmra.mrb[0].mxu0 %v75
  %v436 = vpop.f32.mrb[0].mxu0
  %v437 = vadd.f32 0.0, %v436
  %v438 = vpop.f32.mrb[0].mxu0
  %439 = vmatprep.mubr.f32.mxu0 0.0
  %440 = vmatmul.mubr.f32.gmra.mrb[0].mxu0 %v78
  %v441 = vpop.f32.mrb[0].mxu0
  %v442 = vadd.f32 0.0, %v441
  %v443 = vpop.f32.mrb[0].mxu0
  %444 = vmatprep.mubr.f32.mxu0 0.0
  %445 = vmatmul.mubr.f32.gmra.mrb[0].mxu0 %v81
  %v446 = vpop.f32.mrb[0].mxu0
  %v447 = vadd.f32 0.0, %v446
  %v448 = vpop.f32.mrb[0].mxu0
  %449 = vmatprep.mubr.f32.mxu0 0.0
  %450 = vmatmul.mubr.f32.gmra.mrb[0].mxu0 %v84
  %v451 = vpop.f32.mrb[0].mxu0
  %v452 = vadd.f32 0.0, %v451
  %v453 = vpop.f32.mrb[0].mxu0
  %454 = vmatprep.mubr.f32.mxu0 0.0
  %455 = vmatmul.mubr.f32.gmra.mrb[0].mxu0 %v87
  %v456 = vpop.f32.mrb[0].mxu0
  %v457 = vadd.f32 0.0, %v456
  %v458 = vpop.f32.mrb[0].mxu0
  %459 = vmatprep.mubr.f32.mxu0 0.0
  %460 = vmatmul.mubr.f32.gmra.mrb[0].mxu0 %v90
  %v461 = vpop.f32.mrb[0].mxu0
  %v462 = vadd.f32 0.0, %v461
  %v463 = vpop.f32.mrb[0].mxu0
  %464 = vmatprep.mubr.f32.mxu0 0.0
  %465 = vmatmul.mubr.f32.gmra.mrb[0].mxu0 %v93
  %v466 = vpop.f32.mrb[0].mxu0
  %v467 = vadd.f32 0.0, %v466
  %v468 = vpop.f32.mrb[0].mxu0
  %469 = vmatprep.mubr.f32.mxu0 0.0
  %470 = vmatmul.mubr.f32.gmra.mrb[0].mxu0 %v96
  %v471 = vpop.f32.mrb[0].mxu0
  %v472 = vadd.f32 0.0, %v471
  %v473 = vpop.f32.mrb[0].mxu0
  %474 = vmatprep.mubr.f32.mxu0 0.0
  %475 = vmatmul.mubr.f32.gmra.mrb[0].mxu0 %v99
  %v476 = vpop.f32.mrb[0].mxu0
  %v477 = vadd.f32 0.0, %v476
  %v478 = vpop.f32.mrb[0].mxu0
  %479 = vmatprep.mubr.f32.mxu0 0.0
  %480 = vmatmul.mubr.f32.gmra.mrb[0].mxu0 %v102
  %v481 = vpop.f32.mrb[0].mxu0
  %v482 = vadd.f32 0.0, %v481
  %v483 = vpop.f32.mrb[0].mxu0
  %484 = vmatprep.mubr.f32.mxu0 0.0
  %485 = vmatmul.mubr.f32.gmra.mrb[0].mxu0 %v105
  %v486 = vpop.f32.mrb[0].mxu0
  %v487 = vadd.f32 0.0, %v486
  %v488 = vpop.f32.mrb[0].mxu0
  %489 = vdwg.mxu0
  %v490 = vadd.f32 %v329, %v412
  %v491 = vadd.f32 %v330, %v417
  %v492 = vadd.f32 %v331, %v422
  %v493 = vadd.f32 %v332, %v427
  %v494 = vadd.f32 %v333, %v432
  %v495 = vadd.f32 %v334, %v437
  %v496 = vadd.f32 %v335, %v442
  %v497 = vadd.f32 %v336, %v447
  %v498 = vadd.f32 %v337, %v452
  %v499 = vadd.f32 %v338, %v457
  %v500 = vadd.f32 %v339, %v462
  %v501 = vadd.f32 %v340, %v467
  %v502 = vadd.f32 %v341, %v472
  %v503 = vadd.f32 %v342, %v477
  %v504 = vadd.f32 %v343, %v482
  %v505 = vadd.f32 %v344, %v487
  %v506 = vtanh.pop %v490
  %v507 = vtanh.pop %v491
  %v508 = vtanh.pop %v492
  %v509 = vtanh.pop %v493
  %v510 = vtanh.pop %v494
  %v511 = vtanh.pop %v495
  %v512 = vtanh.pop %v496
  %v513 = vtanh.pop %v497
  %v514 = vtanh.pop %v498
  %v515 = vtanh.pop %v499
  %v516 = vtanh.pop %v500
  %v517 = vtanh.pop %v501
  %v518 = vtanh.pop %v502
  %v519 = vtanh.pop %v503
  %v520 = vtanh.pop %v504
  %v521 = vtanh.pop %v505
  %v522 = vmul.f32 %v506, 0.5
  %v523 = vmul.f32 %v507, 0.5
  %v524 = vmul.f32 %v508, 0.5
  %v525 = vmul.f32 %v509, 0.5
  %v526 = vadd.f32 %v522, 0.5
  %v527 = vadd.f32 %v523, 0.5
  %v528 = vadd.f32 %v524, 0.5
  %v529 = vadd.f32 %v525, 0.5
  %v530 = vmul.f32 %v510, 0.5
  %v531 = vmul.f32 %v511, 0.5
  %v532 = vmul.f32 %v512, 0.5
  %v533 = vmul.f32 %v513, 0.5
  %v534 = vadd.f32 %v530, 0.5
  %v535 = vadd.f32 %v531, 0.5
  %v536 = vadd.f32 %v532, 0.5
  %v537 = vadd.f32 %v533, 0.5
  %v538 = vmul.f32 %v518, 0.5
  %v539 = vmul.f32 %v519, 0.5
  %v540 = vmul.f32 %v520, 0.5
  %v541 = vmul.f32 %v521, 0.5
  %v542 = vadd.f32 %v538, 0.5
  %v543 = vadd.f32 %v539, 0.5
  %v544 = vadd.f32 %v540, 0.5
  %v545 = vadd.f32 %v541, 0.5
  %v546 = vmul.f32 %v534, %v316
  %v547 = vmul.f32 %v535, %v317
  %v548 = vmul.f32 %v536, %v318
  %v549 = vmul.f32 %v537, %v319
  %v550 = vmul.f32 %v526, %v514
  %v551 = vmul.f32 %v527, %v515
  %v552 = vmul.f32 %v528, %v516
  %v553 = vmul.f32 %v529, %v517
  %v554 = vadd.f32 %v546, %v550
  %v555 = vadd.f32 %v547, %v551
  %v556 = vadd.f32 %v548, %v552
  %v557 = vadd.f32 %v549, %v553
  %v558 = vtanh.pop %v554
  %v559 = vtanh.pop %v555
  %v560 = vtanh.pop %v556
  %v561 = vtanh.pop %v557
  %v562 = vmul.f32 %v542, %v558
  %v563 = vmul.f32 %v543, %v559
  %v564 = vmul.f32 %v544, %v560
  %v565 = vmul.f32 %v545, %v561
  %s566 = scalar_lea.vmem %s0, 256
  %v567 = vld [vmem:[%s566] sm:$0xff]
  %v568 = vld [vmem:[%s566 + $0x8] sm:$0xff]
  %v569 = vld [vmem:[%s566 + $0x10] sm:$0xff]
  %v570 = vld [vmem:[%s566 + $0x18] sm:$0xff]
  %v571 = vld [vmem:[%s566 + $0x20] sm:$0xff]
  %v572 = vld [vmem:[%s566 + $0x28] sm:$0xff]
  %v573 = vld [vmem:[%s566 + $0x30] sm:$0xff]
  %v574 = vld [vmem:[%s566 + $0x38] sm:$0xff]
  %v575 = vld [vmem:[%s566 + $0x40] sm:$0xff]
  %v576 = vld [vmem:[%s566 + $0x48] sm:$0xff]
  %v577 = vld [vmem:[%s566 + $0x50] sm:$0xff]
  %v578 = vld [vmem:[%s566 + $0x58] sm:$0xff]
  %v579 = vld [vmem:[%s566 + $0x60] sm:$0xff]
  %v580 = vld [vmem:[%s566 + $0x68] sm:$0xff]
  %v581 = vld [vmem:[%s566 + $0x70] sm:$0xff]
  %v582 = vld [vmem:[%s566 + $0x78] sm:$0xff]
  %583 = vmatprep.subr.mxu0 0.0
  %584 = vmatpush1.msra.mxu0 %v562
  %585 = vmatprep.subr.mxu0 0.0
  %586 = vmatpush1.msra.mxu0 %v563
  %587 = vmatprep.subr.mxu0 0.0
  %588 = vmatpush1.msra.mxu0 %v564
  %589 = vmatprep.subr.mxu0 0.0
  %590 = vmatpush1.msra.mxu0 %v565
  %591 = vmatprep.subr.mxu0 0.0
  %592 = vmatpush1.msra.mxu0 0.0
  %593 = vmatprep.subr.mxu0 0.0
  %594 = vmatpush1.msra.mxu0 0.0
  %595 = vmatprep.subr.mxu0 0.0
  %596 = vmatpush1.msra.mxu0 0.0
  %597 = vmatprep.subr.mxu0 0.0
  %598 = vmatpush1.msra.mxu0 0.0
  %599 = vmatprep.subr.mxu0 0.0
  %600 = vmatpush1.msra.mxu0 0.0
  %601 = vmatprep.subr.mxu0 0.0
  %602 = vmatpush1.msra.mxu0 0.0
  %603 = vmatprep.subr.mxu0 0.0
  %604 = vmatpush1.msra.mxu0 0.0
  %605 = vmatprep.subr.mxu0 0.0
  %606 = vmatpush1.msra.mxu0 0.0
  %607 = vmatprep.subr.mxu0 0.0
  %608 = vmatpush1.msra.mxu0 0.0
  %609 = vmatprep.subr.mxu0 0.0
  %610 = vmatpush1.msra.mxu0 0.0
  %611 = vmatprep.subr.mxu0 0.0
  %612 = vmatpush1.msra.mxu0 0.0
  %613 = vmatprep.subr.mxu0 0.0
  %614 = vmatpush1.msra.mxu0 0.0
  %615 = vmatprep.subr.mxu0 0.0
  %616 = vmatpush1.msra.mxu0 0.0
  %617 = vmatprep.subr.mxu0 0.0
  %618 = vmatpush1.msra.mxu0 0.0
  %619 = vmatprep.subr.mxu0 0.0
  %620 = vmatpush1.msra.mxu0 0.0
  %621 = vmatprep.subr.mxu0 0.0
  %622 = vmatpush1.msra.mxu0 0.0
  %623 = vmatprep.subr.mxu0 0.0
  %624 = vmatpush1.msra.mxu0 0.0
  %625 = vmatprep.subr.mxu0 0.0
  %626 = vmatpush1.msra.mxu0 0.0
  %627 = vmatprep.subr.mxu0 0.0
  %628 = vmatpush1.msra.mxu0 0.0
  %629 = vmatprep.subr.mxu0 0.0
  %630 = vmatpush1.msra.mxu0 0.0
  %631 = vmatprep.subr.mxu0 0.0
  %632 = vmatpush1.msra.mxu0 0.0
  %633 = vmatprep.subr.mxu0 0.0
  %634 = vmatpush1.msra.mxu0 0.0
  %635 = vmatprep.subr.mxu0 0.0
  %636 = vmatpush1.msra.mxu0 0.0
  %637 = vmatprep.subr.mxu0 0.0
  %638 = vmatpush1.msra.mxu0 0.0
  %639 = vmatprep.subr.mxu0 0.0
  %640 = vmatpush1.msra.mxu0 0.0
  %641 = vmatprep.subr.mxu0 0.0
  %642 = vmatpush1.msra.mxu0 0.0
  %643 = vmatprep.subr.mxu0 0.0
  %644 = vmatpush1.msra.mxu0 0.0
  %645 = vmatprep.subr.mxu0 0.0
  %646 = vmatpush1.msra.mxu0 0.0
  %647 = vmatprep.mubr.f32.mxu0 0.0
  %648 = vmatmul.mubr.f32.gmra.mrb[0].mxu0 %v60
  %v649 = vpop.f32.mrb[0].mxu0
  %v650 = vadd.f32 0.0, %v649
  %v651 = vpop.f32.mrb[0].mxu0
  %652 = vmatprep.mubr.f32.mxu0 0.0
  %653 = vmatmul.mubr.f32.gmra.mrb[0].mxu0 %v63
  %v654 = vpop.f32.mrb[0].mxu0
  %v655 = vadd.f32 0.0, %v654
  %v656 = vpop.f32.mrb[0].mxu0
  %657 = vmatprep.mubr.f32.mxu0 0.0
  %658 = vmatmul.mubr.f32.gmra.mrb[0].mxu0 %v66
  %v659 = vpop.f32.mrb[0].mxu0
  %v660 = vadd.f32 0.0, %v659
  %v661 = vpop.f32.mrb[0].mxu0
  %662 = vmatprep.mubr.f32.mxu0 0.0
  %663 = vmatmul.mubr.f32.gmra.mrb[0].mxu0 %v69
  %v664 = vpop.f32.mrb[0].mxu0
  %v665 = vadd.f32 0.0, %v664
  %v666 = vpop.f32.mrb[0].mxu0
  %667 = vmatprep.mubr.f32.mxu0 0.0
  %668 = vmatmul.mubr.f32.gmra.mrb[0].mxu0 %v72
  %v669 = vpop.f32.mrb[0].mxu0
  %v670 = vadd.f32 0.0, %v669
  %v671 = vpop.f32.mrb[0].mxu0
  %672 = vmatprep.mubr.f32.mxu0 0.0
  %673 = vmatmul.mubr.f32.gmra.mrb[0].mxu0 %v75
  %v674 = vpop.f32.mrb[0].mxu0
  %v675 = vadd.f32 0.0, %v674
  %v676 = vpop.f32.mrb[0].mxu0
  %677 = vmatprep.mubr.f32.mxu0 0.0
  %678 = vmatmul.mubr.f32.gmra.mrb[0].mxu0 %v78
  %v679 = vpop.f32.mrb[0].mxu0
  %v680 = vadd.f32 0.0, %v679
  %v681 = vpop.f32.mrb[0].mxu0
  %682 = vmatprep.mubr.f32.mxu0 0.0
  %683 = vmatmul.mubr.f32.gmra.mrb[0].mxu0 %v81
  %v684 = vpop.f32.mrb[0].mxu0
  %v685 = vadd.f32 0.0, %v684
  %v686 = vpop.f32.mrb[0].mxu0
  %687 = vmatprep.mubr.f32.mxu0 0.0
  %688 = vmatmul.mubr.f32.gmra.mrb[0].mxu0 %v84
  %v689 = vpop.f32.mrb[0].mxu0
  %v690 = vadd.f32 0.0, %v689
  %v691 = vpop.f32.mrb[0].mxu0
  %692 = vmatprep.mubr.f32.mxu0 0.0
  %693 = vmatmul.mubr.f32.gmra.mrb[0].mxu0 %v87
  %v694 = vpop.f32.mrb[0].mxu0
  %v695 = vadd.f32 0.0, %v694
  %v696 = vpop.f32.mrb[0].mxu0
  %697 = vmatprep.mubr.f32.mxu0 0.0
  %698 = vmatmul.mubr.f32.gmra.mrb[0].mxu0 %v90
  %v699 = vpop.f32.mrb[0].mxu0
  %v700 = vadd.f32 0.0, %v699
  %v701 = vpop.f32.mrb[0].mxu0
  %702 = vmatprep.mubr.f32.mxu0 0.0
  %703 = vmatmul.mubr.f32.gmra.mrb[0].mxu0 %v93
  %v704 = vpop.f32.mrb[0].mxu0
  %v705 = vadd.f32 0.0, %v704
  %v706 = vpop.f32.mrb[0].mxu0
  %707 = vmatprep.mubr.f32.mxu0 0.0
  %708 = vmatmul.mubr.f32.gmra.mrb[0].mxu0 %v96
  %v709 = vpop.f32.mrb[0].mxu0
  %v710 = vadd.f32 0.0, %v709
  %v711 = vpop.f32.mrb[0].mxu0
  %712 = vmatprep.mubr.f32.mxu0 0.0
  %713 = vmatmul.mubr.f32.gmra.mrb[0].mxu0 %v99
  %v714 = vpop.f32.mrb[0].mxu0
  %v715 = vadd.f32 0.0, %v714
  %v716 = vpop.f32.mrb[0].mxu0
  %717 = vmatprep.mubr.f32.mxu0 0.0
  %718 = vmatmul.mubr.f32.gmra.mrb[0].mxu0 %v102
  %v719 = vpop.f32.mrb[0].mxu0
  %v720 = vadd.f32 0.0, %v719
  %v721 = vpop.f32.mrb[0].mxu0
  %722 = vmatprep.mubr.f32.mxu0 0.0
  %723 = vmatmul.mubr.f32.gmra.mrb[0].mxu0 %v105
  %v724 = vpop.f32.mrb[0].mxu0
  %v725 = vadd.f32 0.0, %v724
  %v726 = vpop.f32.mrb[0].mxu0
  %727 = vdwg.mxu0
  %v728 = vadd.f32 %v567, %v650
  %v729 = vadd.f32 %v568, %v655
  %v730 = vadd.f32 %v569, %v660
  %v731 = vadd.f32 %v570, %v665
  %v732 = vadd.f32 %v571, %v670
  %v733 = vadd.f32 %v572, %v675
  %v734 = vadd.f32 %v573, %v680
  %v735 = vadd.f32 %v574, %v685
  %v736 = vadd.f32 %v575, %v690
  %v737 = vadd.f32 %v576, %v695
  %v738 = vadd.f32 %v577, %v700
  %v739 = vadd.f32 %v578, %v705
  %v740 = vadd.f32 %v579, %v710
  %v741 = vadd.f32 %v580, %v715
  %v742 = vadd.f32 %v581, %v720
  %v743 = vadd.f32 %v582, %v725
  %v744 = vtanh.pop %v728
  %v745 = vtanh.pop %v729
  %v746 = vtanh.pop %v730
  %v747 = vtanh.pop %v731
  %v748 = vtanh.pop %v732
  %v749 = vtanh.pop %v733
  %v750 = vtanh.pop %v734
  %v751 = vtanh.pop %v735
  %v752 = vtanh.pop %v736
  %v753 = vtanh.pop %v737
  %v754 = vtanh.pop %v738
  %v755 = vtanh.pop %v739
  %v756 = vtanh.pop %v740
  %v757 = vtanh.pop %v741
  %v758 = vtanh.pop %v742
  %v759 = vtanh.pop %v743
  %v760 = vmul.f32 %v744, 0.5
  %v761 = vmul.f32 %v745, 0.5
  %v762 = vmul.f32 %v746, 0.5
  %v763 = vmul.f32 %v747, 0.5
  %v764 = vadd.f32 %v760, 0.5
  %v765 = vadd.f32 %v761, 0.5
  %v766 = vadd.f32 %v762, 0.5
  %v767 = vadd.f32 %v763, 0.5
  %v768 = vmul.f32 %v748, 0.5
  %v769 = vmul.f32 %v749, 0.5
  %v770 = vmul.f32 %v750, 0.5
  %v771 = vmul.f32 %v751, 0.5
  %v772 = vadd.f32 %v768, 0.5
  %v773 = vadd.f32 %v769, 0.5
  %v774 = vadd.f32 %v770, 0.5
  %v775 = vadd.f32 %v771, 0.5
  %v776 = vmul.f32 %v756, 0.5
  %v777 = vmul.f32 %v757, 0.5
  %v778 = vmul.f32 %v758, 0.5
  %v779 = vmul.f32 %v759, 0.5
  %v780 = vadd.f32 %v776, 0.5
  %v781 = vadd.f32 %v777, 0.5
  %v782 = vadd.f32 %v778, 0.5
  %v783 = vadd.f32 %v779, 0.5
  %v784 = vmul.f32 %v772, %v554
  %v785 = vmul.f32 %v773, %v555
  %v786 = vmul.f32 %v774, %v556
  %v787 = vmul.f32 %v775, %v557
  %v788 = vmul.f32 %v764, %v752
  %v789 = vmul.f32 %v765, %v753
  %v790 = vmul.f32 %v766, %v754
  %v791 = vmul.f32 %v767, %v755
  %v792 = vadd.f32 %v784, %v788
  %v793 = vadd.f32 %v785, %v789
  %v794 = vadd.f32 %v786, %v790
  %v795 = vadd.f32 %v787, %v791
  %v796 = vtanh.pop %v792
  %v797 = vtanh.pop %v793
  %v798 = vtanh.pop %v794
  %v799 = vtanh.pop %v795
  %v800 = vmul.f32 %v780, %v796
  %v801 = vmul.f32 %v781, %v797
  %v802 = vmul.f32 %v782, %v798
  %v803 = vmul.f32 %v783, %v799
  %s804 = scalar_lea.vmem %s0, 384
  %v805 = vld [vmem:[%s804] sm:$0xff]
  %v806 = vld [vmem:[%s804 + $0x8] sm:$0xff]
  %v807 = vld [vmem:[%s804 + $0x10] sm:$0xff]
  %v808 = vld [vmem:[%s804 + $0x18] sm:$0xff]
  %v809 = vld [vmem:[%s804 + $0x20] sm:$0xff]
  %v810 = vld [vmem:[%s804 + $0x28] sm:$0xff]
  %v811 = vld [vmem:[%s804 + $0x30] sm:$0xff]
  %v812 = vld [vmem:[%s804 + $0x38] sm:$0xff]
  %v813 = vld [vmem:[%s804 + $0x40] sm:$0xff]
  %v814 = vld [vmem:[%s804 + $0x48] sm:$0xff]
  %v815 = vld [vmem:[%s804 + $0x50] sm:$0xff]
  %v816 = vld [vmem:[%s804 + $0x58] sm:$0xff]
  %v817 = vld [vmem:[%s804 + $0x60] sm:$0xff]
  %v818 = vld [vmem:[%s804 + $0x68] sm:$0xff]
  %v819 = vld [vmem:[%s804 + $0x70] sm:$0xff]
  %v820 = vld [vmem:[%s804 + $0x78] sm:$0xff]
  %821 = vmatprep.subr.mxu0 0.0
  %822 = vmatpush1.msra.mxu0 %v800
  %823 = vmatprep.subr.mxu0 0.0
  %824 = vmatpush1.msra.mxu0 %v801
  %825 = vmatprep.subr.mxu0 0.0
  %826 = vmatpush1.msra.mxu0 %v802
  %827 = vmatprep.subr.mxu0 0.0
  %828 = vmatpush1.msra.mxu0 %v803
  %829 = vmatprep.subr.mxu0 0.0
  %830 = vmatpush1.msra.mxu0 0.0
  %831 = vmatprep.subr.mxu0 0.0
  %832 = vmatpush1.msra.mxu0 0.0
  %833 = vmatprep.subr.mxu0 0.0
  %834 = vmatpush1.msra.mxu0 0.0
  %835 = vmatprep.subr.mxu0 0.0
  %836 = vmatpush1.msra.mxu0 0.0
  %837 = vmatprep.subr.mxu0 0.0
  %838 = vmatpush1.msra.mxu0 0.0
  %839 = vmatprep.subr.mxu0 0.0
  %840 = vmatpush1.msra.mxu0 0.0
  %841 = vmatprep.subr.mxu0 0.0
  %842 = vmatpush1.msra.mxu0 0.0
  %843 = vmatprep.subr.mxu0 0.0
  %844 = vmatpush1.msra.mxu0 0.0
  %845 = vmatprep.subr.mxu0 0.0
  %846 = vmatpush1.msra.mxu0 0.0
  %847 = vmatprep.subr.mxu0 0.0
  %848 = vmatpush1.msra.mxu0 0.0
  %849 = vmatprep.subr.mxu0 0.0
  %850 = vmatpush1.msra.mxu0 0.0
  %851 = vmatprep.subr.mxu0 0.0
  %852 = vmatpush1.msra.mxu0 0.0
  %853 = vmatprep.subr.mxu0 0.0
  %854 = vmatpush1.msra.mxu0 0.0
  %855 = vmatprep.subr.mxu0 0.0
  %856 = vmatpush1.msra.mxu0 0.0
  %857 = vmatprep.subr.mxu0 0.0
  %858 = vmatpush1.msra.mxu0 0.0
  %859 = vmatprep.subr.mxu0 0.0
  %860 = vmatpush1.msra.mxu0 0.0
  %861 = vmatprep.subr.mxu0 0.0
  %862 = vmatpush1.msra.mxu0 0.0
  %863 = vmatprep.subr.mxu0 0.0
  %864 = vmatpush1.msra.mxu0 0.0
  %865 = vmatprep.subr.mxu0 0.0
  %866 = vmatpush1.msra.mxu0 0.0
  %867 = vmatprep.subr.mxu0 0.0
  %868 = vmatpush1.msra.mxu0 0.0
  %869 = vmatprep.subr.mxu0 0.0
  %870 = vmatpush1.msra.mxu0 0.0
  %871 = vmatprep.subr.mxu0 0.0
  %872 = vmatpush1.msra.mxu0 0.0
  %873 = vmatprep.subr.mxu0 0.0
  %874 = vmatpush1.msra.mxu0 0.0
  %875 = vmatprep.subr.mxu0 0.0
  %876 = vmatpush1.msra.mxu0 0.0
  %877 = vmatprep.subr.mxu0 0.0
  %878 = vmatpush1.msra.mxu0 0.0
  %879 = vmatprep.subr.mxu0 0.0
  %880 = vmatpush1.msra.mxu0 0.0
  %881 = vmatprep.subr.mxu0 0.0
  %882 = vmatpush1.msra.mxu0 0.0
  %883 = vmatprep.subr.mxu0 0.0
  %884 = vmatpush1.msra.mxu0 0.0
  %885 = vmatprep.mubr.f32.mxu0 0.0
  %886 = vmatmul.mubr.f32.gmra.mrb[0].mxu0 %v60
  %v887 = vpop.f32.mrb[0].mxu0
  %v888 = vadd.f32 0.0, %v887
  %v889 = vpop.f32.mrb[0].mxu0
  %890 = vmatprep.mubr.f32.mxu0 0.0
  %891 = vmatmul.mubr.f32.gmra.mrb[0].mxu0 %v63
  %v892 = vpop.f32.mrb[0].mxu0
  %v893 = vadd.f32 0.0, %v892
  %v894 = vpop.f32.mrb[0].mxu0
  %895 = vmatprep.mubr.f32.mxu0 0.0
  %896 = vmatmul.mubr.f32.gmra.mrb[0].mxu0 %v66
  %v897 = vpop.f32.mrb[0].mxu0
  %v898 = vadd.f32 0.0, %v897
  %v899 = vpop.f32.mrb[0].mxu0
  %900 = vmatprep.mubr.f32.mxu0 0.0
  %901 = vmatmul.mubr.f32.gmra.mrb[0].mxu0 %v69
  %v902 = vpop.f32.mrb[0].mxu0
  %v903 = vadd.f32 0.0, %v902
  %v904 = vpop.f32.mrb[0].mxu0
  %905 = vmatprep.mubr.f32.mxu0 0.0
  %906 = vmatmul.mubr.f32.gmra.mrb[0].mxu0 %v72
  %v907 = vpop.f32.mrb[0].mxu0
  %v908 = vadd.f32 0.0, %v907
  %v909 = vpop.f32.mrb[0].mxu0
  %910 = vmatprep.mubr.f32.mxu0 0.0
  %911 = vmatmul.mubr.f32.gmra.mrb[0].mxu0 %v75
  %v912 = vpop.f32.mrb[0].mxu0
  %v913 = vadd.f32 0.0, %v912
  %v914 = vpop.f32.mrb[0].mxu0
  %915 = vmatprep.mubr.f32.mxu0 0.0
  %916 = vmatmul.mubr.f32.gmra.mrb[0].mxu0 %v78
  %v917 = vpop.f32.mrb[0].mxu0
  %v918 = vadd.f32 0.0, %v917
  %v919 = vpop.f32.mrb[0].mxu0
  %920 = vmatprep.mubr.f32.mxu0 0.0
  %921 = vmatmul.mubr.f32.gmra.mrb[0].mxu0 %v81
  %v922 = vpop.f32.mrb[0].mxu0
  %v923 = vadd.f32 0.0, %v922
  %v924 = vpop.f32.mrb[0].mxu0
  %925 = vmatprep.mubr.f32.mxu0 0.0
  %926 = vmatmul.mubr.f32.gmra.mrb[0].mxu0 %v84
  %v927 = vpop.f32.mrb[0].mxu0
  %v928 = vadd.f32 0.0, %v927
  %v929 = vpop.f32.mrb[0].mxu0
  %930 = vmatprep.mubr.f32.mxu0 0.0
  %931 = vmatmul.mubr.f32.gmra.mrb[0].mxu0 %v87
  %v932 = vpop.f32.mrb[0].mxu0
  %v933 = vadd.f32 0.0, %v932
  %v934 = vpop.f32.mrb[0].mxu0
  %935 = vmatprep.mubr.f32.mxu0 0.0
  %936 = vmatmul.mubr.f32.gmra.mrb[0].mxu0 %v90
  %v937 = vpop.f32.mrb[0].mxu0
  %v938 = vadd.f32 0.0, %v937
  %v939 = vpop.f32.mrb[0].mxu0
  %940 = vmatprep.mubr.f32.mxu0 0.0
  %941 = vmatmul.mubr.f32.gmra.mrb[0].mxu0 %v93
  %v942 = vpop.f32.mrb[0].mxu0
  %v943 = vadd.f32 0.0, %v942
  %v944 = vpop.f32.mrb[0].mxu0
  %945 = vmatprep.mubr.f32.mxu0 0.0
  %946 = vmatmul.mubr.f32.gmra.mrb[0].mxu0 %v96
  %v947 = vpop.f32.mrb[0].mxu0
  %v948 = vadd.f32 0.0, %v947
  %v949 = vpop.f32.mrb[0].mxu0
  %950 = vmatprep.mubr.f32.mxu0 0.0
  %951 = vmatmul.mubr.f32.gmra.mrb[0].mxu0 %v99
  %v952 = vpop.f32.mrb[0].mxu0
  %v953 = vadd.f32 0.0, %v952
  %v954 = vpop.f32.mrb[0].mxu0
  %955 = vmatprep.mubr.f32.mxu0 0.0
  %956 = vmatmul.mubr.f32.gmra.mrb[0].mxu0 %v102
  %v957 = vpop.f32.mrb[0].mxu0
  %v958 = vadd.f32 0.0, %v957
  %v959 = vpop.f32.mrb[0].mxu0
  %960 = vmatprep.mubr.f32.mxu0 0.0
  %961 = vmatmul.mubr.f32.gmra.mrb[0].mxu0 %v105
  %v962 = vpop.f32.mrb[0].mxu0
  %v963 = vadd.f32 0.0, %v962
  %v964 = vpop.f32.mrb[0].mxu0
  %965 = vdwg.mxu0
  %v966 = vadd.f32 %v805, %v888
  %v967 = vadd.f32 %v806, %v893
  %v968 = vadd.f32 %v807, %v898
  %v969 = vadd.f32 %v808, %v903
  %v970 = vadd.f32 %v809, %v908
  %v971 = vadd.f32 %v810, %v913
  %v972 = vadd.f32 %v811, %v918
  %v973 = vadd.f32 %v812, %v923
  %v974 = vadd.f32 %v813, %v928
  %v975 = vadd.f32 %v814, %v933
  %v976 = vadd.f32 %v815, %v938
  %v977 = vadd.f32 %v816, %v943
  %v978 = vadd.f32 %v817, %v948
  %v979 = vadd.f32 %v818, %v953
  %v980 = vadd.f32 %v819, %v958
  %v981 = vadd.f32 %v820, %v963
  %v982 = vtanh.pop %v966
  %v983 = vtanh.pop %v967
  %v984 = vtanh.pop %v968
  %v985 = vtanh.pop %v969
  %v986 = vtanh.pop %v970
  %v987 = vtanh.pop %v971
  %v988 = vtanh.pop %v972
  %v989 = vtanh.pop %v973
  %v990 = vtanh.pop %v974
  %v991 = vtanh.pop %v975
  %v992 = vtanh.pop %v976
  %v993 = vtanh.pop %v977
  %v994 = vtanh.pop %v978
  %v995 = vtanh.pop %v979
  %v996 = vtanh.pop %v980
  %v997 = vtanh.pop %v981
  %v998 = vmul.f32 %v982, 0.5
  %v999 = vmul.f32 %v983, 0.5
  %v1000 = vmul.f32 %v984, 0.5
  %v1001 = vmul.f32 %v985, 0.5
  %v1002 = vadd.f32 %v998, 0.5
  %v1003 = vadd.f32 %v999, 0.5
  %v1004 = vadd.f32 %v1000, 0.5
  %v1005 = vadd.f32 %v1001, 0.5
  %v1006 = vmul.f32 %v986, 0.5
  %v1007 = vmul.f32 %v987, 0.5
  %v1008 = vmul.f32 %v988, 0.5
  %v1009 = vmul.f32 %v989, 0.5
  %v1010 = vadd.f32 %v1006, 0.5
  %v1011 = vadd.f32 %v1007, 0.5
  %v1012 = vadd.f32 %v1008, 0.5
  %v1013 = vadd.f32 %v1009, 0.5
  %v1014 = vmul.f32 %v994, 0.5
  %v1015 = vmul.f32 %v995, 0.5
  %v1016 = vmul.f32 %v996, 0.5
  %v1017 = vmul.f32 %v997, 0.5
  %v1018 = vadd.f32 %v1014, 0.5
  %v1019 = vadd.f32 %v1015, 0.5
  %v1020 = vadd.f32 %v1016, 0.5
  %v1021 = vadd.f32 %v1017, 0.5
  %v1022 = vmul.f32 %v1010, %v792
  %v1023 = vmul.f32 %v1011, %v793
  %v1024 = vmul.f32 %v1012, %v794
  %v1025 = vmul.f32 %v1013, %v795
  %v1026 = vmul.f32 %v1002, %v990
  %v1027 = vmul.f32 %v1003, %v991
  %v1028 = vmul.f32 %v1004, %v992
  %v1029 = vmul.f32 %v1005, %v993
  %v1030 = vadd.f32 %v1022, %v1026
  %v1031 = vadd.f32 %v1023, %v1027
  %v1032 = vadd.f32 %v1024, %v1028
  %v1033 = vadd.f32 %v1025, %v1029
  %v1034 = vtanh.pop %v1030
  %v1035 = vtanh.pop %v1031
  %v1036 = vtanh.pop %v1032
  %v1037 = vtanh.pop %v1033
  %v1038 = vmul.f32 %v1018, %v1034
  %v1039 = vmul.f32 %v1019, %v1035
  %v1040 = vmul.f32 %v1020, %v1036
  %v1041 = vmul.f32 %v1021, %v1037
  %s1042 = scalar_lea.vmem %s0, 512
  %v1043 = vld [vmem:[%s1042] sm:$0xff]
  %v1044 = vld [vmem:[%s1042 + $0x8] sm:$0xff]
  %v1045 = vld [vmem:[%s1042 + $0x10] sm:$0xff]
  %v1046 = vld [vmem:[%s1042 + $0x18] sm:$0xff]
  %v1047 = vld [vmem:[%s1042 + $0x20] sm:$0xff]
  %v1048 = vld [vmem:[%s1042 + $0x28] sm:$0xff]
  %v1049 = vld [vmem:[%s1042 + $0x30] sm:$0xff]
  %v1050 = vld [vmem:[%s1042 + $0x38] sm:$0xff]
  %v1051 = vld [vmem:[%s1042 + $0x40] sm:$0xff]
  %v1052 = vld [vmem:[%s1042 + $0x48] sm:$0xff]
  %v1053 = vld [vmem:[%s1042 + $0x50] sm:$0xff]
  %v1054 = vld [vmem:[%s1042 + $0x58] sm:$0xff]
  %v1055 = vld [vmem:[%s1042 + $0x60] sm:$0xff]
  %v1056 = vld [vmem:[%s1042 + $0x68] sm:$0xff]
  %v1057 = vld [vmem:[%s1042 + $0x70] sm:$0xff]
  %v1058 = vld [vmem:[%s1042 + $0x78] sm:$0xff]
  %1059 = vmatprep.subr.mxu0 0.0
  %1060 = vmatpush1.msra.mxu0 %v1038
  %1061 = vmatprep.subr.mxu0 0.0
  %1062 = vmatpush1.msra.mxu0 %v1039
  %1063 = vmatprep.subr.mxu0 0.0
  %1064 = vmatpush1.msra.mxu0 %v1040
  %1065 = vmatprep.subr.mxu0 0.0
  %1066 = vmatpush1.msra.mxu0 %v1041
  %1067 = vmatprep.subr.mxu0 0.0
  %1068 = vmatpush1.msra.mxu0 0.0
  %1069 = vmatprep.subr.mxu0 0.0
  %1070 = vmatpush1.msra.mxu0 0.0
  %1071 = vmatprep.subr.mxu0 0.0
  %1072 = vmatpush1.msra.mxu0 0.0
  %1073 = vmatprep.subr.mxu0 0.0
  %1074 = vmatpush1.msra.mxu0 0.0
  %1075 = vmatprep.subr.mxu0 0.0
  %1076 = vmatpush1.msra.mxu0 0.0
  %1077 = vmatprep.subr.mxu0 0.0
  %1078 = vmatpush1.msra.mxu0 0.0
  %1079 = vmatprep.subr.mxu0 0.0
  %1080 = vmatpush1.msra.mxu0 0.0
  %1081 = vmatprep.subr.mxu0 0.0
  %1082 = vmatpush1.msra.mxu0 0.0
  %1083 = vmatprep.subr.mxu0 0.0
  %1084 = vmatpush1.msra.mxu0 0.0
  %1085 = vmatprep.subr.mxu0 0.0
  %1086 = vmatpush1.msra.mxu0 0.0
  %1087 = vmatprep.subr.mxu0 0.0
  %1088 = vmatpush1.msra.mxu0 0.0
  %1089 = vmatprep.subr.mxu0 0.0
  %1090 = vmatpush1.msra.mxu0 0.0
  %1091 = vmatprep.subr.mxu0 0.0
  %1092 = vmatpush1.msra.mxu0 0.0
  %1093 = vmatprep.subr.mxu0 0.0
  %1094 = vmatpush1.msra.mxu0 0.0
  %1095 = vmatprep.subr.mxu0 0.0
  %1096 = vmatpush1.msra.mxu0 0.0
  %1097 = vmatprep.subr.mxu0 0.0
  %1098 = vmatpush1.msra.mxu0 0.0
  %1099 = vmatprep.subr.mxu0 0.0
  %1100 = vmatpush1.msra.mxu0 0.0
  %1101 = vmatprep.subr.mxu0 0.0
  %1102 = vmatpush1.msra.mxu0 0.0
  %1103 = vmatprep.subr.mxu0 0.0
  %1104 = vmatpush1.msra.mxu0 0.0
  %1105 = vmatprep.subr.mxu0 0.0
  %1106 = vmatpush1.msra.mxu0 0.0
  %1107 = vmatprep.subr.mxu0 0.0
  %1108 = vmatpush1.msra.mxu0 0.0
  %1109 = vmatprep.subr.mxu0 0.0
  %1110 = vmatpush1.msra.mxu0 0.0
  %1111 = vmatprep.subr.mxu0 0.0
  %1112 = vmatpush1.msra.mxu0 0.0
  %1113 = vmatprep.subr.mxu0 0.0
  %1114 = vmatpush1.msra.mxu0 0.0
  %1115 = vmatprep.subr.mxu0 0.0
  %1116 = vmatpush1.msra.mxu0 0.0
  %1117 = vmatprep.subr.mxu0 0.0
  %1118 = vmatpush1.msra.mxu0 0.0
  %1119 = vmatprep.subr.mxu0 0.0
  %1120 = vmatpush1.msra.mxu0 0.0
  %1121 = vmatprep.subr.mxu0 0.0
  %1122 = vmatpush1.msra.mxu0 0.0
  %1123 = vmatprep.mubr.f32.mxu0 0.0
  %1124 = vmatmul.mubr.f32.gmra.mrb[0].mxu0 %v60
  %v1125 = vpop.f32.mrb[0].mxu0
  %v1126 = vadd.f32 0.0, %v1125
  %v1127 = vpop.f32.mrb[0].mxu0
  %1128 = vmatprep.mubr.f32.mxu0 0.0
  %1129 = vmatmul.mubr.f32.gmra.mrb[0].mxu0 %v63
  %v1130 = vpop.f32.mrb[0].mxu0
  %v1131 = vadd.f32 0.0, %v1130
  %v1132 = vpop.f32.mrb[0].mxu0
  %1133 = vmatprep.mubr.f32.mxu0 0.0
  %1134 = vmatmul.mubr.f32.gmra.mrb[0].mxu0 %v66
  %v1135 = vpop.f32.mrb[0].mxu0
  %v1136 = vadd.f32 0.0, %v1135
  %v1137 = vpop.f32.mrb[0].mxu0
  %1138 = vmatprep.mubr.f32.mxu0 0.0
  %1139 = vmatmul.mubr.f32.gmra.mrb[0].mxu0 %v69
  %v1140 = vpop.f32.mrb[0].mxu0
  %v1141 = vadd.f32 0.0, %v1140
  %v1142 = vpop.f32.mrb[0].mxu0
  %1143 = vmatprep.mubr.f32.mxu0 0.0
  %1144 = vmatmul.mubr.f32.gmra.mrb[0].mxu0 %v72
  %v1145 = vpop.f32.mrb[0].mxu0
  %v1146 = vadd.f32 0.0, %v1145
  %v1147 = vpop.f32.mrb[0].mxu0
  %1148 = vmatprep.mubr.f32.mxu0 0.0
  %1149 = vmatmul.mubr.f32.gmra.mrb[0].mxu0 %v75
  %v1150 = vpop.f32.mrb[0].mxu0
  %v1151 = vadd.f32 0.0, %v1150
  %v1152 = vpop.f32.mrb[0].mxu0
  %1153 = vmatprep.mubr.f32.mxu0 0.0
  %1154 = vmatmul.mubr.f32.gmra.mrb[0].mxu0 %v78
  %v1155 = vpop.f32.mrb[0].mxu0
  %v1156 = vadd.f32 0.0, %v1155
  %v1157 = vpop.f32.mrb[0].mxu0
  %1158 = vmatprep.mubr.f32.mxu0 0.0
  %1159 = vmatmul.mubr.f32.gmra.mrb[0].mxu0 %v81
  %v1160 = vpop.f32.mrb[0].mxu0
  %v1161 = vadd.f32 0.0, %v1160
  %v1162 = vpop.f32.mrb[0].mxu0
  %1163 = vmatprep.mubr.f32.mxu0 0.0
  %1164 = vmatmul.mubr.f32.gmra.mrb[0].mxu0 %v84
  %v1165 = vpop.f32.mrb[0].mxu0
  %v1166 = vadd.f32 0.0, %v1165
  %v1167 = vpop.f32.mrb[0].mxu0
  %1168 = vmatprep.mubr.f32.mxu0 0.0
  %1169 = vmatmul.mubr.f32.gmra.mrb[0].mxu0 %v87
  %v1170 = vpop.f32.mrb[0].mxu0
  %v1171 = vadd.f32 0.0, %v1170
  %v1172 = vpop.f32.mrb[0].mxu0
  %1173 = vmatprep.mubr.f32.mxu0 0.0
  %1174 = vmatmul.mubr.f32.gmra.mrb[0].mxu0 %v90
  %v1175 = vpop.f32.mrb[0].mxu0
  %v1176 = vadd.f32 0.0, %v1175
  %v1177 = vpop.f32.mrb[0].mxu0
  %1178 = vmatprep.mubr.f32.mxu0 0.0
  %1179 = vmatmul.mubr.f32.gmra.mrb[0].mxu0 %v93
  %v1180 = vpop.f32.mrb[0].mxu0
  %v1181 = vadd.f32 0.0, %v1180
  %v1182 = vpop.f32.mrb[0].mxu0
  %1183 = vmatprep.mubr.f32.mxu0 0.0
  %1184 = vmatmul.mubr.f32.gmra.mrb[0].mxu0 %v96
  %v1185 = vpop.f32.mrb[0].mxu0
  %v1186 = vadd.f32 0.0, %v1185
  %v1187 = vpop.f32.mrb[0].mxu0
  %1188 = vmatprep.mubr.f32.mxu0 0.0
  %1189 = vmatmul.mubr.f32.gmra.mrb[0].mxu0 %v99
  %v1190 = vpop.f32.mrb[0].mxu0
  %v1191 = vadd.f32 0.0, %v1190
  %v1192 = vpop.f32.mrb[0].mxu0
  %1193 = vmatprep.mubr.f32.mxu0 0.0
  %1194 = vmatmul.mubr.f32.gmra.mrb[0].mxu0 %v102
  %v1195 = vpop.f32.mrb[0].mxu0
  %v1196 = vadd.f32 0.0, %v1195
  %v1197 = vpop.f32.mrb[0].mxu0
  %1198 = vmatprep.mubr.f32.mxu0 0.0
  %1199 = vmatmul.mubr.f32.gmra.mrb[0].mxu0 %v105
  %v1200 = vpop.f32.mrb[0].mxu0
  %v1201 = vadd.f32 0.0, %v1200
  %v1202 = vpop.f32.mrb[0].mxu0
  %1203 = vdwg.mxu0
  %v1204 = vadd.f32 %v1043, %v1126
  %v1205 = vadd.f32 %v1044, %v1131
  %v1206 = vadd.f32 %v1045, %v1136
  %v1207 = vadd.f32 %v1046, %v1141
  %v1208 = vadd.f32 %v1047, %v1146
  %v1209 = vadd.f32 %v1048, %v1151
  %v1210 = vadd.f32 %v1049, %v1156
  %v1211 = vadd.f32 %v1050, %v1161
  %v1212 = vadd.f32 %v1051, %v1166
  %v1213 = vadd.f32 %v1052, %v1171
  %v1214 = vadd.f32 %v1053, %v1176
  %v1215 = vadd.f32 %v1054, %v1181
  %v1216 = vadd.f32 %v1055, %v1186
  %v1217 = vadd.f32 %v1056, %v1191
  %v1218 = vadd.f32 %v1057, %v1196
  %v1219 = vadd.f32 %v1058, %v1201
  %v1220 = vtanh.pop %v1204
  %v1221 = vtanh.pop %v1205
  %v1222 = vtanh.pop %v1206
  %v1223 = vtanh.pop %v1207
  %v1224 = vtanh.pop %v1208
  %v1225 = vtanh.pop %v1209
  %v1226 = vtanh.pop %v1210
  %v1227 = vtanh.pop %v1211
  %v1228 = vtanh.pop %v1212
  %v1229 = vtanh.pop %v1213
  %v1230 = vtanh.pop %v1214
  %v1231 = vtanh.pop %v1215
  %v1232 = vtanh.pop %v1216
  %v1233 = vtanh.pop %v1217
  %v1234 = vtanh.pop %v1218
  %v1235 = vtanh.pop %v1219
  %v1236 = vmul.f32 %v1220, 0.5
  %v1237 = vmul.f32 %v1221, 0.5
  %v1238 = vmul.f32 %v1222, 0.5
  %v1239 = vmul.f32 %v1223, 0.5
  %v1240 = vadd.f32 %v1236, 0.5
  %v1241 = vadd.f32 %v1237, 0.5
  %v1242 = vadd.f32 %v1238, 0.5
  %v1243 = vadd.f32 %v1239, 0.5
  %v1244 = vmul.f32 %v1224, 0.5
  %v1245 = vmul.f32 %v1225, 0.5
  %v1246 = vmul.f32 %v1226, 0.5
  %v1247 = vmul.f32 %v1227, 0.5
  %v1248 = vadd.f32 %v1244, 0.5
  %v1249 = vadd.f32 %v1245, 0.5
  %v1250 = vadd.f32 %v1246, 0.5
  %v1251 = vadd.f32 %v1247, 0.5
  %v1252 = vmul.f32 %v1232, 0.5
  %v1253 = vmul.f32 %v1233, 0.5
  %v1254 = vmul.f32 %v1234, 0.5
  %v1255 = vmul.f32 %v1235, 0.5
  %v1256 = vadd.f32 %v1252, 0.5
  %v1257 = vadd.f32 %v1253, 0.5
  %v1258 = vadd.f32 %v1254, 0.5
  %v1259 = vadd.f32 %v1255, 0.5
  %v1260 = vmul.f32 %v1248, %v1030
  %v1261 = vmul.f32 %v1249, %v1031
  %v1262 = vmul.f32 %v1250, %v1032
  %v1263 = vmul.f32 %v1251, %v1033
  %v1264 = vmul.f32 %v1240, %v1228
  %v1265 = vmul.f32 %v1241, %v1229
  %v1266 = vmul.f32 %v1242, %v1230
  %v1267 = vmul.f32 %v1243, %v1231
  %v1268 = vadd.f32 %v1260, %v1264
  %v1269 = vadd.f32 %v1261, %v1265
  %v1270 = vadd.f32 %v1262, %v1266
  %v1271 = vadd.f32 %v1263, %v1267
  %v1272 = vtanh.pop %v1268
  %v1273 = vtanh.pop %v1269
  %v1274 = vtanh.pop %v1270
  %v1275 = vtanh.pop %v1271
  %v1276 = vmul.f32 %v1256, %v1272
  %v1277 = vmul.f32 %v1257, %v1273
  %v1278 = vmul.f32 %v1258, %v1274
  %v1279 = vmul.f32 %v1259, %v1275
  %s1280 = scalar_lea.vmem %s0, 640
  %v1281 = vld [vmem:[%s1280] sm:$0xff]
  %v1282 = vld [vmem:[%s1280 + $0x8] sm:$0xff]
  %v1283 = vld [vmem:[%s1280 + $0x10] sm:$0xff]
  %v1284 = vld [vmem:[%s1280 + $0x18] sm:$0xff]
  %v1285 = vld [vmem:[%s1280 + $0x20] sm:$0xff]
  %v1286 = vld [vmem:[%s1280 + $0x28] sm:$0xff]
  %v1287 = vld [vmem:[%s1280 + $0x30] sm:$0xff]
  %v1288 = vld [vmem:[%s1280 + $0x38] sm:$0xff]
  %v1289 = vld [vmem:[%s1280 + $0x40] sm:$0xff]
  %v1290 = vld [vmem:[%s1280 + $0x48] sm:$0xff]
  %v1291 = vld [vmem:[%s1280 + $0x50] sm:$0xff]
  %v1292 = vld [vmem:[%s1280 + $0x58] sm:$0xff]
  %v1293 = vld [vmem:[%s1280 + $0x60] sm:$0xff]
  %v1294 = vld [vmem:[%s1280 + $0x68] sm:$0xff]
  %v1295 = vld [vmem:[%s1280 + $0x70] sm:$0xff]
  %v1296 = vld [vmem:[%s1280 + $0x78] sm:$0xff]
  %1297 = vmatprep.subr.mxu0 0.0
  %1298 = vmatpush1.msra.mxu0 %v1276
  %1299 = vmatprep.subr.mxu0 0.0
  %1300 = vmatpush1.msra.mxu0 %v1277
  %1301 = vmatprep.subr.mxu0 0.0
  %1302 = vmatpush1.msra.mxu0 %v1278
  %1303 = vmatprep.subr.mxu0 0.0
  %1304 = vmatpush1.msra.mxu0 %v1279
  %1305 = vmatprep.subr.mxu0 0.0
  %1306 = vmatpush1.msra.mxu0 0.0
  %1307 = vmatprep.subr.mxu0 0.0
  %1308 = vmatpush1.msra.mxu0 0.0
  %1309 = vmatprep.subr.mxu0 0.0
  %1310 = vmatpush1.msra.mxu0 0.0
  %1311 = vmatprep.subr.mxu0 0.0
  %1312 = vmatpush1.msra.mxu0 0.0
  %1313 = vmatprep.subr.mxu0 0.0
  %1314 = vmatpush1.msra.mxu0 0.0
  %1315 = vmatprep.subr.mxu0 0.0
  %1316 = vmatpush1.msra.mxu0 0.0
  %1317 = vmatprep.subr.mxu0 0.0
  %1318 = vmatpush1.msra.mxu0 0.0
  %1319 = vmatprep.subr.mxu0 0.0
  %1320 = vmatpush1.msra.mxu0 0.0
  %1321 = vmatprep.subr.mxu0 0.0
  %1322 = vmatpush1.msra.mxu0 0.0
  %1323 = vmatprep.subr.mxu0 0.0
  %1324 = vmatpush1.msra.mxu0 0.0
  %1325 = vmatprep.subr.mxu0 0.0
  %1326 = vmatpush1.msra.mxu0 0.0
  %1327 = vmatprep.subr.mxu0 0.0
  %1328 = vmatpush1.msra.mxu0 0.0
  %1329 = vmatprep.subr.mxu0 0.0
  %1330 = vmatpush1.msra.mxu0 0.0
  %1331 = vmatprep.subr.mxu0 0.0
  %1332 = vmatpush1.msra.mxu0 0.0
  %1333 = vmatprep.subr.mxu0 0.0
  %1334 = vmatpush1.msra.mxu0 0.0
  %1335 = vmatprep.subr.mxu0 0.0
  %1336 = vmatpush1.msra.mxu0 0.0
  %1337 = vmatprep.subr.mxu0 0.0
  %1338 = vmatpush1.msra.mxu0 0.0
  %1339 = vmatprep.subr.mxu0 0.0
  %1340 = vmatpush1.msra.mxu0 0.0
  %1341 = vmatprep.subr.mxu0 0.0
  %1342 = vmatpush1.msra.mxu0 0.0
  %1343 = vmatprep.subr.mxu0 0.0
  %1344 = vmatpush1.msra.mxu0 0.0
  %1345 = vmatprep.subr.mxu0 0.0
  %1346 = vmatpush1.msra.mxu0 0.0
  %1347 = vmatprep.subr.mxu0 0.0
  %1348 = vmatpush1.msra.mxu0 0.0
  %1349 = vmatprep.subr.mxu0 0.0
  %1350 = vmatpush1.msra.mxu0 0.0
  %1351 = vmatprep.subr.mxu0 0.0
  %1352 = vmatpush1.msra.mxu0 0.0
  %1353 = vmatprep.subr.mxu0 0.0
  %1354 = vmatpush1.msra.mxu0 0.0
  %1355 = vmatprep.subr.mxu0 0.0
  %1356 = vmatpush1.msra.mxu0 0.0
  %1357 = vmatprep.subr.mxu0 0.0
  %1358 = vmatpush1.msra.mxu0 0.0
  %1359 = vmatprep.subr.mxu0 0.0
  %1360 = vmatpush1.msra.mxu0 0.0
  %1361 = vmatprep.mubr.f32.mxu0 0.0
  %1362 = vmatmul.mubr.f32.gmra.mrb[0].mxu0 %v60
  %v1363 = vpop.f32.mrb[0].mxu0
  %v1364 = vadd.f32 0.0, %v1363
  %v1365 = vpop.f32.mrb[0].mxu0
  %1366 = vmatprep.mubr.f32.mxu0 0.0
  %1367 = vmatmul.mubr.f32.gmra.mrb[0].mxu0 %v63
  %v1368 = vpop.f32.mrb[0].mxu0
  %v1369 = vadd.f32 0.0, %v1368
  %v1370 = vpop.f32.mrb[0].mxu0
  %1371 = vmatprep.mubr.f32.mxu0 0.0
  %1372 = vmatmul.mubr.f32.gmra.mrb[0].mxu0 %v66
  %v1373 = vpop.f32.mrb[0].mxu0
  %v1374 = vadd.f32 0.0, %v1373
  %v1375 = vpop.f32.mrb[0].mxu0
  %1376 = vmatprep.mubr.f32.mxu0 0.0
  %1377 = vmatmul.mubr.f32.gmra.mrb[0].mxu0 %v69
  %v1378 = vpop.f32.mrb[0].mxu0
  %v1379 = vadd.f32 0.0, %v1378
  %v1380 = vpop.f32.mrb[0].mxu0
  %1381 = vmatprep.mubr.f32.mxu0 0.0
  %1382 = vmatmul.mubr.f32.gmra.mrb[0].mxu0 %v72
  %v1383 = vpop.f32.mrb[0].mxu0
  %v1384 = vadd.f32 0.0, %v1383
  %v1385 = vpop.f32.mrb[0].mxu0
  %1386 = vmatprep.mubr.f32.mxu0 0.0
  %1387 = vmatmul.mubr.f32.gmra.mrb[0].mxu0 %v75
  %v1388 = vpop.f32.mrb[0].mxu0
  %v1389 = vadd.f32 0.0, %v1388
  %v1390 = vpop.f32.mrb[0].mxu0
  %1391 = vmatprep.mubr.f32.mxu0 0.0
  %1392 = vmatmul.mubr.f32.gmra.mrb[0].mxu0 %v78
  %v1393 = vpop.f32.mrb[0].mxu0
  %v1394 = vadd.f32 0.0, %v1393
  %v1395 = vpop.f32.mrb[0].mxu0
  %1396 = vmatprep.mubr.f32.mxu0 0.0
  %1397 = vmatmul.mubr.f32.gmra.mrb[0].mxu0 %v81
  %v1398 = vpop.f32.mrb[0].mxu0
  %v1399 = vadd.f32 0.0, %v1398
  %v1400 = vpop.f32.mrb[0].mxu0
  %1401 = vmatprep.mubr.f32.mxu0 0.0
  %1402 = vmatmul.mubr.f32.gmra.mrb[0].mxu0 %v84
  %v1403 = vpop.f32.mrb[0].mxu0
  %v1404 = vadd.f32 0.0, %v1403
  %v1405 = vpop.f32.mrb[0].mxu0
  %1406 = vmatprep.mubr.f32.mxu0 0.0
  %1407 = vmatmul.mubr.f32.gmra.mrb[0].mxu0 %v87
  %v1408 = vpop.f32.mrb[0].mxu0
  %v1409 = vadd.f32 0.0, %v1408
  %v1410 = vpop.f32.mrb[0].mxu0
  %1411 = vmatprep.mubr.f32.mxu0 0.0
  %1412 = vmatmul.mubr.f32.gmra.mrb[0].mxu0 %v90
  %v1413 = vpop.f32.mrb[0].mxu0
  %v1414 = vadd.f32 0.0, %v1413
  %v1415 = vpop.f32.mrb[0].mxu0
  %1416 = vmatprep.mubr.f32.mxu0 0.0
  %1417 = vmatmul.mubr.f32.gmra.mrb[0].mxu0 %v93
  %v1418 = vpop.f32.mrb[0].mxu0
  %v1419 = vadd.f32 0.0, %v1418
  %v1420 = vpop.f32.mrb[0].mxu0
  %1421 = vmatprep.mubr.f32.mxu0 0.0
  %1422 = vmatmul.mubr.f32.gmra.mrb[0].mxu0 %v96
  %v1423 = vpop.f32.mrb[0].mxu0
  %v1424 = vadd.f32 0.0, %v1423
  %v1425 = vpop.f32.mrb[0].mxu0
  %1426 = vmatprep.mubr.f32.mxu0 0.0
  %1427 = vmatmul.mubr.f32.gmra.mrb[0].mxu0 %v99
  %v1428 = vpop.f32.mrb[0].mxu0
  %v1429 = vadd.f32 0.0, %v1428
  %v1430 = vpop.f32.mrb[0].mxu0
  %1431 = vmatprep.mubr.f32.mxu0 0.0
  %1432 = vmatmul.mubr.f32.gmra.mrb[0].mxu0 %v102
  %v1433 = vpop.f32.mrb[0].mxu0
  %v1434 = vadd.f32 0.0, %v1433
  %v1435 = vpop.f32.mrb[0].mxu0
  %1436 = vmatprep.mubr.f32.mxu0 0.0
  %1437 = vmatmul.mubr.f32.gmra.mrb[0].mxu0 %v105
  %v1438 = vpop.f32.mrb[0].mxu0
  %v1439 = vadd.f32 0.0, %v1438
  %v1440 = vpop.f32.mrb[0].mxu0
  %1441 = vdwg.mxu0
  %v1442 = vadd.f32 %v1281, %v1364
  %v1443 = vadd.f32 %v1282, %v1369
  %v1444 = vadd.f32 %v1283, %v1374
  %v1445 = vadd.f32 %v1284, %v1379
  %v1446 = vadd.f32 %v1285, %v1384
  %v1447 = vadd.f32 %v1286, %v1389
  %v1448 = vadd.f32 %v1287, %v1394
  %v1449 = vadd.f32 %v1288, %v1399
  %v1450 = vadd.f32 %v1289, %v1404
  %v1451 = vadd.f32 %v1290, %v1409
  %v1452 = vadd.f32 %v1291, %v1414
  %v1453 = vadd.f32 %v1292, %v1419
  %v1454 = vadd.f32 %v1293, %v1424
  %v1455 = vadd.f32 %v1294, %v1429
  %v1456 = vadd.f32 %v1295, %v1434
  %v1457 = vadd.f32 %v1296, %v1439
  %v1458 = vtanh.pop %v1442
  %v1459 = vtanh.pop %v1443
  %v1460 = vtanh.pop %v1444
  %v1461 = vtanh.pop %v1445
  %v1462 = vtanh.pop %v1446
  %v1463 = vtanh.pop %v1447
  %v1464 = vtanh.pop %v1448
  %v1465 = vtanh.pop %v1449
  %v1466 = vtanh.pop %v1450
  %v1467 = vtanh.pop %v1451
  %v1468 = vtanh.pop %v1452
  %v1469 = vtanh.pop %v1453
  %v1470 = vtanh.pop %v1454
  %v1471 = vtanh.pop %v1455
  %v1472 = vtanh.pop %v1456
  %v1473 = vtanh.pop %v1457
  %v1474 = vmul.f32 %v1458, 0.5
  %v1475 = vmul.f32 %v1459, 0.5
  %v1476 = vmul.f32 %v1460, 0.5
  %v1477 = vmul.f32 %v1461, 0.5
  %v1478 = vadd.f32 %v1474, 0.5
  %v1479 = vadd.f32 %v1475, 0.5
  %v1480 = vadd.f32 %v1476, 0.5
  %v1481 = vadd.f32 %v1477, 0.5
  %v1482 = vmul.f32 %v1462, 0.5
  %v1483 = vmul.f32 %v1463, 0.5
  %v1484 = vmul.f32 %v1464, 0.5
  %v1485 = vmul.f32 %v1465, 0.5
  %v1486 = vadd.f32 %v1482, 0.5
  %v1487 = vadd.f32 %v1483, 0.5
  %v1488 = vadd.f32 %v1484, 0.5
  %v1489 = vadd.f32 %v1485, 0.5
  %v1490 = vmul.f32 %v1470, 0.5
  %v1491 = vmul.f32 %v1471, 0.5
  %v1492 = vmul.f32 %v1472, 0.5
  %v1493 = vmul.f32 %v1473, 0.5
  %v1494 = vadd.f32 %v1490, 0.5
  %v1495 = vadd.f32 %v1491, 0.5
  %v1496 = vadd.f32 %v1492, 0.5
  %v1497 = vadd.f32 %v1493, 0.5
  %v1498 = vmul.f32 %v1486, %v1268
  %v1499 = vmul.f32 %v1487, %v1269
  %v1500 = vmul.f32 %v1488, %v1270
  %v1501 = vmul.f32 %v1489, %v1271
  %v1502 = vmul.f32 %v1478, %v1466
  %v1503 = vmul.f32 %v1479, %v1467
  %v1504 = vmul.f32 %v1480, %v1468
  %v1505 = vmul.f32 %v1481, %v1469
  %v1506 = vadd.f32 %v1498, %v1502
  %v1507 = vadd.f32 %v1499, %v1503
  %v1508 = vadd.f32 %v1500, %v1504
  %v1509 = vadd.f32 %v1501, %v1505
  %v1510 = vtanh.pop %v1506
  %v1511 = vtanh.pop %v1507
  %v1512 = vtanh.pop %v1508
  %v1513 = vtanh.pop %v1509
  %v1514 = vmul.f32 %v1494, %v1510
  %v1515 = vmul.f32 %v1495, %v1511
  %v1516 = vmul.f32 %v1496, %v1512
  %v1517 = vmul.f32 %v1497, %v1513
  %s1518 = scalar_lea.vmem %s0, 768
  %v1519 = vld [vmem:[%s1518] sm:$0xff]
  %v1520 = vld [vmem:[%s1518 + $0x8] sm:$0xff]
  %v1521 = vld [vmem:[%s1518 + $0x10] sm:$0xff]
  %v1522 = vld [vmem:[%s1518 + $0x18] sm:$0xff]
  %v1523 = vld [vmem:[%s1518 + $0x20] sm:$0xff]
  %v1524 = vld [vmem:[%s1518 + $0x28] sm:$0xff]
  %v1525 = vld [vmem:[%s1518 + $0x30] sm:$0xff]
  %v1526 = vld [vmem:[%s1518 + $0x38] sm:$0xff]
  %v1527 = vld [vmem:[%s1518 + $0x40] sm:$0xff]
  %v1528 = vld [vmem:[%s1518 + $0x48] sm:$0xff]
  %v1529 = vld [vmem:[%s1518 + $0x50] sm:$0xff]
  %v1530 = vld [vmem:[%s1518 + $0x58] sm:$0xff]
  %v1531 = vld [vmem:[%s1518 + $0x60] sm:$0xff]
  %v1532 = vld [vmem:[%s1518 + $0x68] sm:$0xff]
  %v1533 = vld [vmem:[%s1518 + $0x70] sm:$0xff]
  %v1534 = vld [vmem:[%s1518 + $0x78] sm:$0xff]
  %1535 = vmatprep.subr.mxu0 0.0
  %1536 = vmatpush1.msra.mxu0 %v1514
  %1537 = vmatprep.subr.mxu0 0.0
  %1538 = vmatpush1.msra.mxu0 %v1515
  %1539 = vmatprep.subr.mxu0 0.0
  %1540 = vmatpush1.msra.mxu0 %v1516
  %1541 = vmatprep.subr.mxu0 0.0
  %1542 = vmatpush1.msra.mxu0 %v1517
  %1543 = vmatprep.subr.mxu0 0.0
  %1544 = vmatpush1.msra.mxu0 0.0
  %1545 = vmatprep.subr.mxu0 0.0
  %1546 = vmatpush1.msra.mxu0 0.0
  %1547 = vmatprep.subr.mxu0 0.0
  %1548 = vmatpush1.msra.mxu0 0.0
  %1549 = vmatprep.subr.mxu0 0.0
  %1550 = vmatpush1.msra.mxu0 0.0
  %1551 = vmatprep.subr.mxu0 0.0
  %1552 = vmatpush1.msra.mxu0 0.0
  %1553 = vmatprep.subr.mxu0 0.0
  %1554 = vmatpush1.msra.mxu0 0.0
  %1555 = vmatprep.subr.mxu0 0.0
  %1556 = vmatpush1.msra.mxu0 0.0
  %1557 = vmatprep.subr.mxu0 0.0
  %1558 = vmatpush1.msra.mxu0 0.0
  %1559 = vmatprep.subr.mxu0 0.0
  %1560 = vmatpush1.msra.mxu0 0.0
  %1561 = vmatprep.subr.mxu0 0.0
  %1562 = vmatpush1.msra.mxu0 0.0
  %1563 = vmatprep.subr.mxu0 0.0
  %1564 = vmatpush1.msra.mxu0 0.0
  %1565 = vmatprep.subr.mxu0 0.0
  %1566 = vmatpush1.msra.mxu0 0.0
  %1567 = vmatprep.subr.mxu0 0.0
  %1568 = vmatpush1.msra.mxu0 0.0
  %1569 = vmatprep.subr.mxu0 0.0
  %1570 = vmatpush1.msra.mxu0 0.0
  %1571 = vmatprep.subr.mxu0 0.0
  %1572 = vmatpush1.msra.mxu0 0.0
  %1573 = vmatprep.subr.mxu0 0.0
  %1574 = vmatpush1.msra.mxu0 0.0
  %1575 = vmatprep.subr.mxu0 0.0
  %1576 = vmatpush1.msra.mxu0 0.0
  %1577 = vmatprep.subr.mxu0 0.0
  %1578 = vmatpush1.msra.mxu0 0.0
  %1579 = vmatprep.subr.mxu0 0.0
  %1580 = vmatpush1.msra.mxu0 0.0
  %1581 = vmatprep.subr.mxu0 0.0
  %1582 = vmatpush1.msra.mxu0 0.0
  %1583 = vmatprep.subr.mxu0 0.0
  %1584 = vmatpush1.msra.mxu0 0.0
  %1585 = vmatprep.subr.mxu0 0.0
  %1586 = vmatpush1.msra.mxu0 0.0
  %1587 = vmatprep.subr.mxu0 0.0
  %1588 = vmatpush1.msra.mxu0 0.0
  %1589 = vmatprep.subr.mxu0 0.0
  %1590 = vmatpush1.msra.mxu0 0.0
  %1591 = vmatprep.subr.mxu0 0.0
  %1592 = vmatpush1.msra.mxu0 0.0
  %1593 = vmatprep.subr.mxu0 0.0
  %1594 = vmatpush1.msra.mxu0 0.0
  %1595 = vmatprep.subr.mxu0 0.0
  %1596 = vmatpush1.msra.mxu0 0.0
  %1597 = vmatprep.subr.mxu0 0.0
  %1598 = vmatpush1.msra.mxu0 0.0
  %1599 = vmatprep.mubr.f32.mxu0 0.0
  %1600 = vmatmul.mubr.f32.gmra.mrb[0].mxu0 %v60
  %v1601 = vpop.f32.mrb[0].mxu0
  %v1602 = vadd.f32 0.0, %v1601
  %v1603 = vpop.f32.mrb[0].mxu0
  %1604 = vmatprep.mubr.f32.mxu0 0.0
  %1605 = vmatmul.mubr.f32.gmra.mrb[0].mxu0 %v63
  %v1606 = vpop.f32.mrb[0].mxu0
  %v1607 = vadd.f32 0.0, %v1606
  %v1608 = vpop.f32.mrb[0].mxu0
  %1609 = vmatprep.mubr.f32.mxu0 0.0
  %1610 = vmatmul.mubr.f32.gmra.mrb[0].mxu0 %v66
  %v1611 = vpop.f32.mrb[0].mxu0
  %v1612 = vadd.f32 0.0, %v1611
  %v1613 = vpop.f32.mrb[0].mxu0
  %1614 = vmatprep.mubr.f32.mxu0 0.0
  %1615 = vmatmul.mubr.f32.gmra.mrb[0].mxu0 %v69
  %v1616 = vpop.f32.mrb[0].mxu0
  %v1617 = vadd.f32 0.0, %v1616
  %v1618 = vpop.f32.mrb[0].mxu0
  %1619 = vmatprep.mubr.f32.mxu0 0.0
  %1620 = vmatmul.mubr.f32.gmra.mrb[0].mxu0 %v72
  %v1621 = vpop.f32.mrb[0].mxu0
  %v1622 = vadd.f32 0.0, %v1621
  %v1623 = vpop.f32.mrb[0].mxu0
  %1624 = vmatprep.mubr.f32.mxu0 0.0
  %1625 = vmatmul.mubr.f32.gmra.mrb[0].mxu0 %v75
  %v1626 = vpop.f32.mrb[0].mxu0
  %v1627 = vadd.f32 0.0, %v1626
  %v1628 = vpop.f32.mrb[0].mxu0
  %1629 = vmatprep.mubr.f32.mxu0 0.0
  %1630 = vmatmul.mubr.f32.gmra.mrb[0].mxu0 %v78
  %v1631 = vpop.f32.mrb[0].mxu0
  %v1632 = vadd.f32 0.0, %v1631
  %v1633 = vpop.f32.mrb[0].mxu0
  %1634 = vmatprep.mubr.f32.mxu0 0.0
  %1635 = vmatmul.mubr.f32.gmra.mrb[0].mxu0 %v81
  %v1636 = vpop.f32.mrb[0].mxu0
  %v1637 = vadd.f32 0.0, %v1636
  %v1638 = vpop.f32.mrb[0].mxu0
  %1639 = vmatprep.mubr.f32.mxu0 0.0
  %1640 = vmatmul.mubr.f32.gmra.mrb[0].mxu0 %v84
  %v1641 = vpop.f32.mrb[0].mxu0
  %v1642 = vadd.f32 0.0, %v1641
  %v1643 = vpop.f32.mrb[0].mxu0
  %1644 = vmatprep.mubr.f32.mxu0 0.0
  %1645 = vmatmul.mubr.f32.gmra.mrb[0].mxu0 %v87
  %v1646 = vpop.f32.mrb[0].mxu0
  %v1647 = vadd.f32 0.0, %v1646
  %v1648 = vpop.f32.mrb[0].mxu0
  %1649 = vmatprep.mubr.f32.mxu0 0.0
  %1650 = vmatmul.mubr.f32.gmra.mrb[0].mxu0 %v90
  %v1651 = vpop.f32.mrb[0].mxu0
  %v1652 = vadd.f32 0.0, %v1651
  %v1653 = vpop.f32.mrb[0].mxu0
  %1654 = vmatprep.mubr.f32.mxu0 0.0
  %1655 = vmatmul.mubr.f32.gmra.mrb[0].mxu0 %v93
  %v1656 = vpop.f32.mrb[0].mxu0
  %v1657 = vadd.f32 0.0, %v1656
  %v1658 = vpop.f32.mrb[0].mxu0
  %1659 = vmatprep.mubr.f32.mxu0 0.0
  %1660 = vmatmul.mubr.f32.gmra.mrb[0].mxu0 %v96
  %v1661 = vpop.f32.mrb[0].mxu0
  %v1662 = vadd.f32 0.0, %v1661
  %v1663 = vpop.f32.mrb[0].mxu0
  %1664 = vmatprep.mubr.f32.mxu0 0.0
  %1665 = vmatmul.mubr.f32.gmra.mrb[0].mxu0 %v99
  %v1666 = vpop.f32.mrb[0].mxu0
  %v1667 = vadd.f32 0.0, %v1666
  %v1668 = vpop.f32.mrb[0].mxu0
  %1669 = vmatprep.mubr.f32.mxu0 0.0
  %1670 = vmatmul.mubr.f32.gmra.mrb[0].mxu0 %v102
  %v1671 = vpop.f32.mrb[0].mxu0
  %v1672 = vadd.f32 0.0, %v1671
  %v1673 = vpop.f32.mrb[0].mxu0
  %1674 = vmatprep.mubr.f32.mxu0 0.0
  %1675 = vmatmul.mubr.f32.gmra.mrb[0].mxu0 %v105
  %v1676 = vpop.f32.mrb[0].mxu0
  %v1677 = vadd.f32 0.0, %v1676
  %v1678 = vpop.f32.mrb[0].mxu0
  %1679 = vdwg.mxu0
  %v1680 = vadd.f32 %v1519, %v1602
  %v1681 = vadd.f32 %v1520, %v1607
  %v1682 = vadd.f32 %v1521, %v1612
  %v1683 = vadd.f32 %v1522, %v1617
  %v1684 = vadd.f32 %v1523, %v1622
  %v1685 = vadd.f32 %v1524, %v1627
  %v1686 = vadd.f32 %v1525, %v1632
  %v1687 = vadd.f32 %v1526, %v1637
  %v1688 = vadd.f32 %v1527, %v1642
  %v1689 = vadd.f32 %v1528, %v1647
  %v1690 = vadd.f32 %v1529, %v1652
  %v1691 = vadd.f32 %v1530, %v1657
  %v1692 = vadd.f32 %v1531, %v1662
  %v1693 = vadd.f32 %v1532, %v1667
  %v1694 = vadd.f32 %v1533, %v1672
  %v1695 = vadd.f32 %v1534, %v1677
  %v1696 = vtanh.pop %v1680
  %v1697 = vtanh.pop %v1681
  %v1698 = vtanh.pop %v1682
  %v1699 = vtanh.pop %v1683
  %v1700 = vtanh.pop %v1684
  %v1701 = vtanh.pop %v1685
  %v1702 = vtanh.pop %v1686
  %v1703 = vtanh.pop %v1687
  %v1704 = vtanh.pop %v1688
  %v1705 = vtanh.pop %v1689
  %v1706 = vtanh.pop %v1690
  %v1707 = vtanh.pop %v1691
  %v1708 = vtanh.pop %v1692
  %v1709 = vtanh.pop %v1693
  %v1710 = vtanh.pop %v1694
  %v1711 = vtanh.pop %v1695
  %v1712 = vmul.f32 %v1696, 0.5
  %v1713 = vmul.f32 %v1697, 0.5
  %v1714 = vmul.f32 %v1698, 0.5
  %v1715 = vmul.f32 %v1699, 0.5
  %v1716 = vadd.f32 %v1712, 0.5
  %v1717 = vadd.f32 %v1713, 0.5
  %v1718 = vadd.f32 %v1714, 0.5
  %v1719 = vadd.f32 %v1715, 0.5
  %v1720 = vmul.f32 %v1700, 0.5
  %v1721 = vmul.f32 %v1701, 0.5
  %v1722 = vmul.f32 %v1702, 0.5
  %v1723 = vmul.f32 %v1703, 0.5
  %v1724 = vadd.f32 %v1720, 0.5
  %v1725 = vadd.f32 %v1721, 0.5
  %v1726 = vadd.f32 %v1722, 0.5
  %v1727 = vadd.f32 %v1723, 0.5
  %v1728 = vmul.f32 %v1708, 0.5
  %v1729 = vmul.f32 %v1709, 0.5
  %v1730 = vmul.f32 %v1710, 0.5
  %v1731 = vmul.f32 %v1711, 0.5
  %v1732 = vadd.f32 %v1728, 0.5
  %v1733 = vadd.f32 %v1729, 0.5
  %v1734 = vadd.f32 %v1730, 0.5
  %v1735 = vadd.f32 %v1731, 0.5
  %v1736 = vmul.f32 %v1724, %v1506
  %v1737 = vmul.f32 %v1725, %v1507
  %v1738 = vmul.f32 %v1726, %v1508
  %v1739 = vmul.f32 %v1727, %v1509
  %v1740 = vmul.f32 %v1716, %v1704
  %v1741 = vmul.f32 %v1717, %v1705
  %v1742 = vmul.f32 %v1718, %v1706
  %v1743 = vmul.f32 %v1719, %v1707
  %v1744 = vadd.f32 %v1736, %v1740
  %v1745 = vadd.f32 %v1737, %v1741
  %v1746 = vadd.f32 %v1738, %v1742
  %v1747 = vadd.f32 %v1739, %v1743
  %v1748 = vtanh.pop %v1744
  %v1749 = vtanh.pop %v1745
  %v1750 = vtanh.pop %v1746
  %v1751 = vtanh.pop %v1747
  %v1752 = vmul.f32 %v1732, %v1748
  %v1753 = vmul.f32 %v1733, %v1749
  %v1754 = vmul.f32 %v1734, %v1750
  %v1755 = vmul.f32 %v1735, %v1751
  %s1756 = scalar_lea.vmem %s0, 896
  %v1757 = vld [vmem:[%s1756] sm:$0xff]
  %v1758 = vld [vmem:[%s1756 + $0x8] sm:$0xff]
  %v1759 = vld [vmem:[%s1756 + $0x10] sm:$0xff]
  %v1760 = vld [vmem:[%s1756 + $0x18] sm:$0xff]
  %v1761 = vld [vmem:[%s1756 + $0x20] sm:$0xff]
  %v1762 = vld [vmem:[%s1756 + $0x28] sm:$0xff]
  %v1763 = vld [vmem:[%s1756 + $0x30] sm:$0xff]
  %v1764 = vld [vmem:[%s1756 + $0x38] sm:$0xff]
  %v1765 = vld [vmem:[%s1756 + $0x40] sm:$0xff]
  %v1766 = vld [vmem:[%s1756 + $0x48] sm:$0xff]
  %v1767 = vld [vmem:[%s1756 + $0x50] sm:$0xff]
  %v1768 = vld [vmem:[%s1756 + $0x58] sm:$0xff]
  %v1769 = vld [vmem:[%s1756 + $0x60] sm:$0xff]
  %v1770 = vld [vmem:[%s1756 + $0x68] sm:$0xff]
  %v1771 = vld [vmem:[%s1756 + $0x70] sm:$0xff]
  %v1772 = vld [vmem:[%s1756 + $0x78] sm:$0xff]
  %1773 = vmatprep.subr.mxu0 0.0
  %1774 = vmatpush1.msra.mxu0 %v1752
  %1775 = vmatprep.subr.mxu0 0.0
  %1776 = vmatpush1.msra.mxu0 %v1753
  %1777 = vmatprep.subr.mxu0 0.0
  %1778 = vmatpush1.msra.mxu0 %v1754
  %1779 = vmatprep.subr.mxu0 0.0
  %1780 = vmatpush1.msra.mxu0 %v1755
  %1781 = vmatprep.subr.mxu0 0.0
  %1782 = vmatpush1.msra.mxu0 0.0
  %1783 = vmatprep.subr.mxu0 0.0
  %1784 = vmatpush1.msra.mxu0 0.0
  %1785 = vmatprep.subr.mxu0 0.0
  %1786 = vmatpush1.msra.mxu0 0.0
  %1787 = vmatprep.subr.mxu0 0.0
  %1788 = vmatpush1.msra.mxu0 0.0
  %1789 = vmatprep.subr.mxu0 0.0
  %1790 = vmatpush1.msra.mxu0 0.0
  %1791 = vmatprep.subr.mxu0 0.0
  %1792 = vmatpush1.msra.mxu0 0.0
  %1793 = vmatprep.subr.mxu0 0.0
  %1794 = vmatpush1.msra.mxu0 0.0
  %1795 = vmatprep.subr.mxu0 0.0
  %1796 = vmatpush1.msra.mxu0 0.0
  %1797 = vmatprep.subr.mxu0 0.0
  %1798 = vmatpush1.msra.mxu0 0.0
  %1799 = vmatprep.subr.mxu0 0.0
  %1800 = vmatpush1.msra.mxu0 0.0
  %1801 = vmatprep.subr.mxu0 0.0
  %1802 = vmatpush1.msra.mxu0 0.0
  %1803 = vmatprep.subr.mxu0 0.0
  %1804 = vmatpush1.msra.mxu0 0.0
  %1805 = vmatprep.subr.mxu0 0.0
  %1806 = vmatpush1.msra.mxu0 0.0
  %1807 = vmatprep.subr.mxu0 0.0
  %1808 = vmatpush1.msra.mxu0 0.0
  %1809 = vmatprep.subr.mxu0 0.0
  %1810 = vmatpush1.msra.mxu0 0.0
  %1811 = vmatprep.subr.mxu0 0.0
  %1812 = vmatpush1.msra.mxu0 0.0
  %1813 = vmatprep.subr.mxu0 0.0
  %1814 = vmatpush1.msra.mxu0 0.0
  %1815 = vmatprep.subr.mxu0 0.0
  %1816 = vmatpush1.msra.mxu0 0.0
  %1817 = vmatprep.subr.mxu0 0.0
  %1818 = vmatpush1.msra.mxu0 0.0
  %1819 = vmatprep.subr.mxu0 0.0
  %1820 = vmatpush1.msra.mxu0 0.0
  %1821 = vmatprep.subr.mxu0 0.0
  %1822 = vmatpush1.msra.mxu0 0.0
  %1823 = vmatprep.subr.mxu0 0.0
  %1824 = vmatpush1.msra.mxu0 0.0
  %1825 = vmatprep.subr.mxu0 0.0
  %1826 = vmatpush1.msra.mxu0 0.0
  %1827 = vmatprep.subr.mxu0 0.0
  %1828 = vmatpush1.msra.mxu0 0.0
  %1829 = vmatprep.subr.mxu0 0.0
  %1830 = vmatpush1.msra.mxu0 0.0
  %1831 = vmatprep.subr.mxu0 0.0
  %1832 = vmatpush1.msra.mxu0 0.0
  %1833 = vmatprep.subr.mxu0 0.0
  %1834 = vmatpush1.msra.mxu0 0.0
  %1835 = vmatprep.subr.mxu0 0.0
  %1836 = vmatpush1.msra.mxu0 0.0
  %1837 = vmatprep.mubr.f32.mxu0 0.0
  %1838 = vmatmul.mubr.f32.gmra.mrb[0].mxu0 %v60
  %v1839 = vpop.f32.mrb[0].mxu0
  %v1840 = vadd.f32 0.0, %v1839
  %v1841 = vpop.f32.mrb[0].mxu0
  %1842 = vmatprep.mubr.f32.mxu0 0.0
  %1843 = vmatmul.mubr.f32.gmra.mrb[0].mxu0 %v63
  %v1844 = vpop.f32.mrb[0].mxu0
  %v1845 = vadd.f32 0.0, %v1844
  %v1846 = vpop.f32.mrb[0].mxu0
  %1847 = vmatprep.mubr.f32.mxu0 0.0
  %1848 = vmatmul.mubr.f32.gmra.mrb[0].mxu0 %v66
  %v1849 = vpop.f32.mrb[0].mxu0
  %v1850 = vadd.f32 0.0, %v1849
  %v1851 = vpop.f32.mrb[0].mxu0
  %1852 = vmatprep.mubr.f32.mxu0 0.0
  %1853 = vmatmul.mubr.f32.gmra.mrb[0].mxu0 %v69
  %v1854 = vpop.f32.mrb[0].mxu0
  %v1855 = vadd.f32 0.0, %v1854
  %v1856 = vpop.f32.mrb[0].mxu0
  %1857 = vmatprep.mubr.f32.mxu0 0.0
  %1858 = vmatmul.mubr.f32.gmra.mrb[0].mxu0 %v72
  %v1859 = vpop.f32.mrb[0].mxu0
  %v1860 = vadd.f32 0.0, %v1859
  %v1861 = vpop.f32.mrb[0].mxu0
  %1862 = vmatprep.mubr.f32.mxu0 0.0
  %1863 = vmatmul.mubr.f32.gmra.mrb[0].mxu0 %v75
  %v1864 = vpop.f32.mrb[0].mxu0
  %v1865 = vadd.f32 0.0, %v1864
  %v1866 = vpop.f32.mrb[0].mxu0
  %1867 = vmatprep.mubr.f32.mxu0 0.0
  %1868 = vmatmul.mubr.f32.gmra.mrb[0].mxu0 %v78
  %v1869 = vpop.f32.mrb[0].mxu0
  %v1870 = vadd.f32 0.0, %v1869
  %v1871 = vpop.f32.mrb[0].mxu0
  %1872 = vmatprep.mubr.f32.mxu0 0.0
  %1873 = vmatmul.mubr.f32.gmra.mrb[0].mxu0 %v81
  %v1874 = vpop.f32.mrb[0].mxu0
  %v1875 = vadd.f32 0.0, %v1874
  %v1876 = vpop.f32.mrb[0].mxu0
  %1877 = vmatprep.mubr.f32.mxu0 0.0
  %1878 = vmatmul.mubr.f32.gmra.mrb[0].mxu0 %v84
  %v1879 = vpop.f32.mrb[0].mxu0
  %v1880 = vadd.f32 0.0, %v1879
  %v1881 = vpop.f32.mrb[0].mxu0
  %1882 = vmatprep.mubr.f32.mxu0 0.0
  %1883 = vmatmul.mubr.f32.gmra.mrb[0].mxu0 %v87
  %v1884 = vpop.f32.mrb[0].mxu0
  %v1885 = vadd.f32 0.0, %v1884
  %v1886 = vpop.f32.mrb[0].mxu0
  %1887 = vmatprep.mubr.f32.mxu0 0.0
  %1888 = vmatmul.mubr.f32.gmra.mrb[0].mxu0 %v90
  %v1889 = vpop.f32.mrb[0].mxu0
  %v1890 = vadd.f32 0.0, %v1889
  %v1891 = vpop.f32.mrb[0].mxu0
  %1892 = vmatprep.mubr.f32.mxu0 0.0
  %1893 = vmatmul.mubr.f32.gmra.mrb[0].mxu0 %v93
  %v1894 = vpop.f32.mrb[0].mxu0
  %v1895 = vadd.f32 0.0, %v1894
  %v1896 = vpop.f32.mrb[0].mxu0
  %1897 = vmatprep.mubr.f32.mxu0 0.0
  %1898 = vmatmul.mubr.f32.gmra.mrb[0].mxu0 %v96
  %v1899 = vpop.f32.mrb[0].mxu0
  %v1900 = vadd.f32 0.0, %v1899
  %v1901 = vpop.f32.mrb[0].mxu0
  %1902 = vmatprep.mubr.f32.mxu0 0.0
  %1903 = vmatmul.mubr.f32.gmra.mrb[0].mxu0 %v99
  %v1904 = vpop.f32.mrb[0].mxu0
  %v1905 = vadd.f32 0.0, %v1904
  %v1906 = vpop.f32.mrb[0].mxu0
  %1907 = vmatprep.mubr.f32.mxu0 0.0
  %1908 = vmatmul.mubr.f32.gmra.mrb[0].mxu0 %v102
  %v1909 = vpop.f32.mrb[0].mxu0
  %v1910 = vadd.f32 0.0, %v1909
  %v1911 = vpop.f32.mrb[0].mxu0
  %1912 = vmatprep.mubr.f32.mxu0 0.0
  %1913 = vmatmul.mubr.f32.gmra.mrb[0].mxu0 %v105
  %v1914 = vpop.f32.mrb[0].mxu0
  %v1915 = vadd.f32 0.0, %v1914
  %v1916 = vpop.f32.mrb[0].mxu0
  %1917 = vdwg.mxu0
  %v1918 = vadd.f32 %v1757, %v1840
  %v1919 = vadd.f32 %v1758, %v1845
  %v1920 = vadd.f32 %v1759, %v1850
  %v1921 = vadd.f32 %v1760, %v1855
  %v1922 = vadd.f32 %v1761, %v1860
  %v1923 = vadd.f32 %v1762, %v1865
  %v1924 = vadd.f32 %v1763, %v1870
  %v1925 = vadd.f32 %v1764, %v1875
  %v1926 = vadd.f32 %v1765, %v1880
  %v1927 = vadd.f32 %v1766, %v1885
  %v1928 = vadd.f32 %v1767, %v1890
  %v1929 = vadd.f32 %v1768, %v1895
  %v1930 = vadd.f32 %v1769, %v1900
  %v1931 = vadd.f32 %v1770, %v1905
  %v1932 = vadd.f32 %v1771, %v1910
  %v1933 = vadd.f32 %v1772, %v1915
  %v1934 = vtanh.pop %v1918
  %v1935 = vtanh.pop %v1919
  %v1936 = vtanh.pop %v1920
  %v1937 = vtanh.pop %v1921
  %v1938 = vtanh.pop %v1922
  %v1939 = vtanh.pop %v1923
  %v1940 = vtanh.pop %v1924
  %v1941 = vtanh.pop %v1925
  %v1942 = vtanh.pop %v1926
  %v1943 = vtanh.pop %v1927
  %v1944 = vtanh.pop %v1928
  %v1945 = vtanh.pop %v1929
  %v1946 = vtanh.pop %v1930
  %v1947 = vtanh.pop %v1931
  %v1948 = vtanh.pop %v1932
  %v1949 = vtanh.pop %v1933
  %v1950 = vmul.f32 %v1934, 0.5
  %v1951 = vmul.f32 %v1935, 0.5
  %v1952 = vmul.f32 %v1936, 0.5
  %v1953 = vmul.f32 %v1937, 0.5
  %v1954 = vadd.f32 %v1950, 0.5
  %v1955 = vadd.f32 %v1951, 0.5
  %v1956 = vadd.f32 %v1952, 0.5
  %v1957 = vadd.f32 %v1953, 0.5
  %v1958 = vmul.f32 %v1938, 0.5
  %v1959 = vmul.f32 %v1939, 0.5
  %v1960 = vmul.f32 %v1940, 0.5
  %v1961 = vmul.f32 %v1941, 0.5
  %v1962 = vadd.f32 %v1958, 0.5
  %v1963 = vadd.f32 %v1959, 0.5
  %v1964 = vadd.f32 %v1960, 0.5
  %v1965 = vadd.f32 %v1961, 0.5
  %v1966 = vmul.f32 %v1946, 0.5
  %v1967 = vmul.f32 %v1947, 0.5
  %v1968 = vmul.f32 %v1948, 0.5
  %v1969 = vmul.f32 %v1949, 0.5
  %v1970 = vadd.f32 %v1966, 0.5
  %v1971 = vadd.f32 %v1967, 0.5
  %v1972 = vadd.f32 %v1968, 0.5
  %v1973 = vadd.f32 %v1969, 0.5
  %v1974 = vmul.f32 %v1962, %v1744
  %v1975 = vmul.f32 %v1963, %v1745
  %v1976 = vmul.f32 %v1964, %v1746
  %v1977 = vmul.f32 %v1965, %v1747
  %v1978 = vmul.f32 %v1954, %v1942
  %v1979 = vmul.f32 %v1955, %v1943
  %v1980 = vmul.f32 %v1956, %v1944
  %v1981 = vmul.f32 %v1957, %v1945
  %v1982 = vadd.f32 %v1974, %v1978
  %v1983 = vadd.f32 %v1975, %v1979
  %v1984 = vadd.f32 %v1976, %v1980
  %v1985 = vadd.f32 %v1977, %v1981
  %v1986 = vtanh.pop %v1982
  %v1987 = vtanh.pop %v1983
  %v1988 = vtanh.pop %v1984
  %v1989 = vtanh.pop %v1985
  %v1990 = vmul.f32 %v1970, %v1986
  %v1991 = vmul.f32 %v1971, %v1987
  %v1992 = vmul.f32 %v1972, %v1988
  %v1993 = vmul.f32 %v1973, %v1989
  %v1994 = vld [vmem:[%s1] sm:$0xff]
  %v1995 = vld [vmem:[%s1 + $0x8] sm:$0xff]
  %v1996 = vld [vmem:[%s1 + $0x10] sm:$0xff]
  %v1997 = vld [vmem:[%s1 + $0x18] sm:$0xff]
  %v1998 = vld [vmem:[%s1 + $0x40] sm:$0xff]
  %v1999 = vld [vmem:[%s1 + $0x48] sm:$0xff]
  %v2000 = vld [vmem:[%s1 + $0x50] sm:$0xff]
  %v2001 = vld [vmem:[%s1 + $0x58] sm:$0xff]
  %v2002 = vld [vmem:[%s1 + $0x60] sm:$0xff]
  %v2003 = vld [vmem:[%s1 + $0x68] sm:$0xff]
  %v2004 = vld [vmem:[%s1 + $0x70] sm:$0xff]
  %v2005 = vld [vmem:[%s1 + $0x78] sm:$0xff]
  %v2006 = vtanh.pop %v1994
  %v2007 = vtanh.pop %v1995
  %v2008 = vtanh.pop %v1996
  %v2009 = vtanh.pop %v1997
  %v2010 = vtanh.pop %v1998
  %v2011 = vtanh.pop %v1999
  %v2012 = vtanh.pop %v2000
  %v2013 = vtanh.pop %v2001
  %v2014 = vtanh.pop %v2002
  %v2015 = vtanh.pop %v2003
  %v2016 = vtanh.pop %v2004
  %v2017 = vtanh.pop %v2005
  %v2018 = vmul.f32 %v2006, 0.5
  %v2019 = vmul.f32 %v2007, 0.5
  %v2020 = vmul.f32 %v2008, 0.5
  %v2021 = vmul.f32 %v2009, 0.5
  %v2022 = vadd.f32 %v2018, 0.5
  %v2023 = vadd.f32 %v2019, 0.5
  %v2024 = vadd.f32 %v2020, 0.5
  %v2025 = vadd.f32 %v2021, 0.5
  %v2026 = vmul.f32 %v2014, 0.5
  %v2027 = vmul.f32 %v2015, 0.5
  %v2028 = vmul.f32 %v2016, 0.5
  %v2029 = vmul.f32 %v2017, 0.5
  %v2030 = vadd.f32 %v2026, 0.5
  %v2031 = vadd.f32 %v2027, 0.5
  %v2032 = vadd.f32 %v2028, 0.5
  %v2033 = vadd.f32 %v2029, 0.5
  %v2034 = vmul.f32 %v2022, %v2010
  %v2035 = vmul.f32 %v2023, %v2011
  %v2036 = vmul.f32 %v2024, %v2012
  %v2037 = vmul.f32 %v2025, %v2013
  %v2038 = vtanh.pop %v2034
  %v2039 = vtanh.pop %v2035
  %v2040 = vtanh.pop %v2036
  %v2041 = vtanh.pop %v2037
  %v2042 = vmul.f32 %v2030, %v2038
  %v2043 = vmul.f32 %v2031, %v2039
  %v2044 = vmul.f32 %v2032, %v2040
  %v2045 = vmul.f32 %v2033, %v2041
  %v2046 = vld [vmem:[%s2] sm:$0x1]
  %v2047 = vmax.f32 %v1990, 0.0
  %v2048 = vmax.f32 %v1991, 0.0
  %v2049 = vmax.f32 %v1992, 0.0
  %v2050 = vmax.f32 %v1993, 0.0
  %v2052 = vlaneseq
  %v2053 = vshrl.u32 %v2052, 7
  %v2054 = vsub.s32 0, %v2053
  %v2055 = vrot.slane %v2046, %v2054
  %v2057 = vmul.f32 %v2047, %v2055
  %v2058 = vmul.f32 %v2048, %v2055
  %v2059 = vmul.f32 %v2049, %v2055
  %v2060 = vmul.f32 %v2050, %v2055
  %v2061 = vmax.f32 %v2042, 0.0
  %v2062 = vmax.f32 %v2043, 0.0
  %v2063 = vmax.f32 %v2044, 0.0
  %v2064 = vmax.f32 %v2045, 0.0
  %v2065 = vmul.f32 %v2061, %v2055
  %v2066 = vmul.f32 %v2062, %v2055
  %v2067 = vmul.f32 %v2063, %v2055
  %v2068 = vmul.f32 %v2064, %v2055
  %v2069 = vld [vmem:[%s4] sm:$0x1f]
  %v2070 = vld [vmem:[%s5] sm:$0x1f]
  %v2072 = vsel %vm58, %v2070, 0
  %2074 = vmatprep.subr.mxu0 0.0
  %2075 = vmatpush1.msra.mxu0 %v2065
  %2076 = vmatprep.subr.mxu0 0.0
  %2077 = vmatpush1.msra.mxu0 %v2066
  %2078 = vmatprep.subr.mxu0 0.0
  %2079 = vmatpush1.msra.mxu0 %v2067
  %2080 = vmatprep.subr.mxu0 0.0
  %2081 = vmatpush1.msra.mxu0 %v2068
  %2082 = vmatprep.subr.mxu0 0.0
  %2083 = vmatpush1.msra.mxu0 0.0
  %2084 = vmatprep.subr.mxu0 0.0
  %2085 = vmatpush1.msra.mxu0 0.0
  %2086 = vmatprep.subr.mxu0 0.0
  %2087 = vmatpush1.msra.mxu0 0.0
  %2088 = vmatprep.subr.mxu0 0.0
  %2089 = vmatpush1.msra.mxu0 0.0
  %2090 = vmatprep.subr.mxu0 0.0
  %2091 = vmatpush1.msra.mxu0 0.0
  %2092 = vmatprep.subr.mxu0 0.0
  %2093 = vmatpush1.msra.mxu0 0.0
  %2094 = vmatprep.subr.mxu0 0.0
  %2095 = vmatpush1.msra.mxu0 0.0
  %2096 = vmatprep.subr.mxu0 0.0
  %2097 = vmatpush1.msra.mxu0 0.0
  %2098 = vmatprep.subr.mxu0 0.0
  %2099 = vmatpush1.msra.mxu0 0.0
  %2100 = vmatprep.subr.mxu0 0.0
  %2101 = vmatpush1.msra.mxu0 0.0
  %2102 = vmatprep.subr.mxu0 0.0
  %2103 = vmatpush1.msra.mxu0 0.0
  %2104 = vmatprep.subr.mxu0 0.0
  %2105 = vmatpush1.msra.mxu0 0.0
  %2106 = vmatprep.subr.mxu0 0.0
  %2107 = vmatpush1.msra.mxu0 0.0
  %2108 = vmatprep.subr.mxu0 0.0
  %2109 = vmatpush1.msra.mxu0 0.0
  %2110 = vmatprep.subr.mxu0 0.0
  %2111 = vmatpush1.msra.mxu0 0.0
  %2112 = vmatprep.subr.mxu0 0.0
  %2113 = vmatpush1.msra.mxu0 0.0
  %2114 = vmatprep.subr.mxu0 0.0
  %2115 = vmatpush1.msra.mxu0 0.0
  %2116 = vmatprep.subr.mxu0 0.0
  %2117 = vmatpush1.msra.mxu0 0.0
  %2118 = vmatprep.subr.mxu0 0.0
  %2119 = vmatpush1.msra.mxu0 0.0
  %2120 = vmatprep.subr.mxu0 0.0
  %2121 = vmatpush1.msra.mxu0 0.0
  %2122 = vmatprep.subr.mxu0 0.0
  %2123 = vmatpush1.msra.mxu0 0.0
  %2124 = vmatprep.subr.mxu0 0.0
  %2125 = vmatpush1.msra.mxu0 0.0
  %2126 = vmatprep.subr.mxu0 0.0
  %2127 = vmatpush1.msra.mxu0 0.0
  %2128 = vmatprep.subr.mxu0 0.0
  %2129 = vmatpush1.msra.mxu0 0.0
  %2130 = vmatprep.subr.mxu0 0.0
  %2131 = vmatpush1.msra.mxu0 0.0
  %2132 = vmatprep.subr.mxu0 0.0
  %2133 = vmatpush1.msra.mxu0 0.0
  %2134 = vmatprep.subr.mxu0 0.0
  %2135 = vmatpush1.msra.mxu0 0.0
  %2136 = vmatprep.subr.mxu0 0.0
  %2137 = vmatpush1.msra.mxu0 0.0
  %2138 = vmatprep.mubr.f32.mxu0 0.0
  %2139 = vmatmul.mubr.f32.gmra.mrb[0].mxu0 %v2072
  %v2140 = vpop.f32.mrb[0].mxu0
  %v2141 = vadd.f32 0.0, %v2140
  %v2142 = vpop.f32.mrb[0].mxu0
  %2143 = vdwg.mxu0
  %v2145 = vsel %vm58, %v2069, 0
  %2147 = vmatprep.subr.mxu0 0.0
  %2148 = vmatpush1.msra.mxu0 %v2057
  %2149 = vmatprep.subr.mxu0 0.0
  %2150 = vmatpush1.msra.mxu0 %v2058
  %2151 = vmatprep.subr.mxu0 0.0
  %2152 = vmatpush1.msra.mxu0 %v2059
  %2153 = vmatprep.subr.mxu0 0.0
  %2154 = vmatpush1.msra.mxu0 %v2060
  %2155 = vmatprep.subr.mxu0 0.0
  %2156 = vmatpush1.msra.mxu0 0.0
  %2157 = vmatprep.subr.mxu0 0.0
  %2158 = vmatpush1.msra.mxu0 0.0
  %2159 = vmatprep.subr.mxu0 0.0
  %2160 = vmatpush1.msra.mxu0 0.0
  %2161 = vmatprep.subr.mxu0 0.0
  %2162 = vmatpush1.msra.mxu0 0.0
  %2163 = vmatprep.subr.mxu0 0.0
  %2164 = vmatpush1.msra.mxu0 0.0
  %2165 = vmatprep.subr.mxu0 0.0
  %2166 = vmatpush1.msra.mxu0 0.0
  %2167 = vmatprep.subr.mxu0 0.0
  %2168 = vmatpush1.msra.mxu0 0.0
  %2169 = vmatprep.subr.mxu0 0.0
  %2170 = vmatpush1.msra.mxu0 0.0
  %2171 = vmatprep.subr.mxu0 0.0
  %2172 = vmatpush1.msra.mxu0 0.0
  %2173 = vmatprep.subr.mxu0 0.0
  %2174 = vmatpush1.msra.mxu0 0.0
  %2175 = vmatprep.subr.mxu0 0.0
  %2176 = vmatpush1.msra.mxu0 0.0
  %2177 = vmatprep.subr.mxu0 0.0
  %2178 = vmatpush1.msra.mxu0 0.0
  %2179 = vmatprep.subr.mxu0 0.0
  %2180 = vmatpush1.msra.mxu0 0.0
  %2181 = vmatprep.subr.mxu0 0.0
  %2182 = vmatpush1.msra.mxu0 0.0
  %2183 = vmatprep.subr.mxu0 0.0
  %2184 = vmatpush1.msra.mxu0 0.0
  %2185 = vmatprep.subr.mxu0 0.0
  %2186 = vmatpush1.msra.mxu0 0.0
  %2187 = vmatprep.subr.mxu0 0.0
  %2188 = vmatpush1.msra.mxu0 0.0
  %2189 = vmatprep.subr.mxu0 0.0
  %2190 = vmatpush1.msra.mxu0 0.0
  %2191 = vmatprep.subr.mxu0 0.0
  %2192 = vmatpush1.msra.mxu0 0.0
  %2193 = vmatprep.subr.mxu0 0.0
  %2194 = vmatpush1.msra.mxu0 0.0
  %2195 = vmatprep.subr.mxu0 0.0
  %2196 = vmatpush1.msra.mxu0 0.0
  %2197 = vmatprep.subr.mxu0 0.0
  %2198 = vmatpush1.msra.mxu0 0.0
  %2199 = vmatprep.subr.mxu0 0.0
  %2200 = vmatpush1.msra.mxu0 0.0
  %2201 = vmatprep.subr.mxu0 0.0
  %2202 = vmatpush1.msra.mxu0 0.0
  %2203 = vmatprep.subr.mxu0 0.0
  %2204 = vmatpush1.msra.mxu0 0.0
  %2205 = vmatprep.subr.mxu0 0.0
  %2206 = vmatpush1.msra.mxu0 0.0
  %2207 = vmatprep.subr.mxu0 0.0
  %2208 = vmatpush1.msra.mxu0 0.0
  %2209 = vmatprep.subr.mxu0 0.0
  %2210 = vmatpush1.msra.mxu0 0.0
  %2211 = vmatprep.mubr.f32.mxu0 0.0
  %2212 = vmatmul.mubr.f32.gmra.mrb[0].mxu0 %v2145
  %v2213 = vpop.f32.mrb[0].mxu0
  %v2214 = vadd.f32 %v2141, %v2213
  %v2215 = vpop.f32.mrb[0].mxu0
  %2216 = vdwg.mxu0
  %v2217 = vld [vmem:[%s6] sm:$0x1f]
  %2219 = vset.pattern.permute.xlu0 0
  %2220 = vperm.xlu0 %2219, %v2217
  %v2221 = vpop.permute.xlu0 %2220
  %v2223 = vadd.f32 %v2214, %v2221
  %vm2224 = vcmask 61440
  %2225 = vst.msk [vmem:[%s7] sm:$0x1f] %vm2224, %v2223
  // Predicated region
  $region30: #{bilstm_cnn_forward.1} parent=0 // pred_check
    _
  $region31: #{bilstm_cnn_forward.1} parent=0 // pred_check_branch
    %2227 = sbr.rel (0) target = $region33
  $region32: #{bilstm_cnn_forward.1} parent=0 // pred_region
    _
  $region33: #{bilstm_cnn_forward.1} parent=0 // pred_fallthru
    _
  // Predicated region
  $region34: #{bilstm_cnn_forward.1} parent=0 // pred_check
    _
  $region35: #{bilstm_cnn_forward.1} parent=0 // pred_check_branch
    %2229 = sbr.rel (0) target = $region37
  $region36: #{bilstm_cnn_forward.1} parent=0 // pred_region
    _
  $region37: #{bilstm_cnn_forward.1} parent=0 // pred_fallthru
    _

</llo_original>
